<compile_context>
chip_gen: v7x
topology: tpu7x:2x2x1
jax: 0.10.0
libtpu: 0.0.40
codegen_flags: <defaults>
</compile_context>

<pallas_src>
import functools
import math

import jax
import jax.numpy as jnp
from jax.experimental import pallas as pl
from jax.experimental.pallas import tpu as pltpu


# ----------------------------- Pallas kernels ----------------------------- #

def _full_spec(shape):
    nd = len(shape)
    return pl.BlockSpec(shape, lambda *args, _nd=nd: (0,) * _nd)


_COMPILER_PARAMS = pltpu.CompilerParams(dimension_semantics=("arbitrary",))


def st_embed_kernel(bow_ref, emb_ref, o_ref):
    # mean-of-token-embeddings approximation of STEncoder: BOW @ E (bf16 MXU, f32 accum)
    o_ref[...] = jnp.dot(bow_ref[...].astype(jnp.bfloat16),
                         emb_ref[...].astype(jnp.bfloat16),
                         preferred_element_type=jnp.float32)


def st_embed(bow, embed_pad):
    N = bow.shape[0]
    HP = embed_pad.shape[1]
    return pl.pallas_call(
        st_embed_kernel,
        grid=(1,),
        in_specs=[_full_spec(bow.shape), _full_spec(embed_pad.shape)],
        out_specs=_full_spec((N, HP)),
        out_shape=jax.ShapeDtypeStruct((N, HP), jnp.float32),
        compiler_params=_COMPILER_PARAMS,
    )(bow, embed_pad)


def gcn_pool_score_kernel(a_ref, x_ref, valid_ref, w_ref, b_ref, pw_ref, o_ref, *, score_col):
    # Fused: mask + gcn_norm of A, GCNConv (relu(A_norm @ (X @ W) + b)), TopKPooling score.
    a = a_ref[...]                                           # [N, N] f32, A + I (unmasked)
    valid = valid_ref[...]                                   # [N, 1] in {0, 1}
    # Degree of the valid-masked graph: deg = valid * (A @ valid)  (one matvec).
    deg = valid * jnp.dot(a, valid, preferred_element_type=jnp.float32)
    dinv = jnp.where(deg > 0.0, jax.lax.rsqrt(jnp.maximum(deg, 1e-12)), 0.0)   # D^-1/2, 0 if dropped
    # X @ W on the MXU with bf16 inputs, f32 accumulation.
    xw = jnp.dot(x_ref[...].astype(jnp.bfloat16), w_ref[...].astype(jnp.bfloat16),
                 preferred_element_type=jnp.float32)         # [N, HP]
    # A_norm @ XW == dinv * (A @ (dinv * XW)); dinv also zeroes rows/cols of dropped nodes.
    agg = dinv * jnp.dot(a.astype(jnp.bfloat16), (dinv * xw).astype(jnp.bfloat16),
                         preferred_element_type=jnp.float32)
    h = jnp.maximum(agg + b_ref[...], 0.0)                   # [N, HP], padded lanes stay 0
    # TopKPooling score = h . (w / ||w||)  (pw is pre-normalized, zero-padded) -> lane reduce.
    score = jnp.sum(h * pw_ref[...], axis=-1, keepdims=True)  # [N, 1]
    # Stash the score in spare lane `score_col` so the only store is a lane-dense [N, HP] slab.
    lane = jax.lax.broadcasted_iota(jnp.int32, h.shape, 1)
    o_ref[...] = jnp.where(lane == score_col, score, h)


def gcn_pool_score(A_raw, x, valid_col, W, b, pw, *, score_col):
    N = A_raw.shape[0]
    HP = W.shape[1]
    kern = functools.partial(gcn_pool_score_kernel, score_col=score_col)
    return pl.pallas_call(
        kern,
        grid=(1,),
        in_specs=[_full_spec(A_raw.shape), _full_spec(x.shape), _full_spec(valid_col.shape),
                  _full_spec(W.shape), _full_spec(b.shape), _full_spec(pw.shape)],
        out_specs=_full_spec((N, HP)),
        out_shape=jax.ShapeDtypeStruct((N, HP), jnp.float32),
        compiler_params=_COMPILER_PARAMS,
    )(A_raw, x, valid_col, W, b, pw)


def topk_attn_pool_kernel(x_ref, valid_ref, mask_ref, wg_ref, bg_ref, prev_ref,
                          out_ref, xg_ref, *, score_col):
    # Fused: TopK feature gating + GlobalAttention pooling + accumulation into `out`.
    x = x_ref[...]                                           # [N, HP]; lane score_col = score
    lane = jax.lax.broadcasted_iota(jnp.int32, x.shape, 1)
    score = jnp.sum(jnp.where(lane == score_col, x, 0.0), axis=-1, keepdims=True)   # [N, 1]
    # TopKPooling output features: x * tanh(score), dropped nodes zeroed.
    xg = x * jnp.tanh(score) * valid_ref[...]                # [N, HP]

    # Gate linear in [1, N] lane orientation: wg [1, HP] contracted with xg [N, HP] (trans-B).
    gate = jax.lax.dot_general(wg_ref[...], xg, (((1,), (1,)), ((), ())),
                               preferred_element_type=jnp.float32) + bg_ref[...]    # [1, N]

    mask = mask_ref[...]                                     # [B, N], valid already folded in
    masked = jnp.where(mask > 0.0, gate, -1e30)              # [B, N]
    m = jnp.max(masked, axis=1, keepdims=True)               # [B, 1] per-graph max (stabilizer)
    e = jnp.exp(masked - m) * mask                           # [B, N]
    denom = jnp.sum(e, axis=1, keepdims=True)                # [B, 1]
    inv = jnp.where(denom > 0.0,
                    pl.reciprocal(jnp.maximum(denom, 1e-30), approx=True),
                    0.0)                                     # guard empty graphs; EUP recip
    w = e * inv                                              # [B, N] per-graph softmax weights
    pooled = jnp.dot(w, xg, preferred_element_type=jnp.float32)   # [B, HP]

    out_ref[...] = prev_ref[...] + pooled                    # in-place accumulate (aliased)
    xg_ref[...] = xg                                         # gated features for the next layer


def topk_attn_pool(h, valid_col, mask_bn, wg, bg, out_prev, *, score_col):
    N, HP = h.shape
    B = mask_bn.shape[0]
    kern = functools.partial(topk_attn_pool_kernel, score_col=score_col)
    return pl.pallas_call(
        kern,
        grid=(1,),
        in_specs=[_full_spec(h.shape), _full_spec(valid_col.shape), _full_spec(mask_bn.shape),
                  _full_spec(wg.shape), _full_spec(bg.shape), _full_spec(out_prev.shape)],
        out_specs=(_full_spec((B, HP)), _full_spec((N, HP))),
        out_shape=(jax.ShapeDtypeStruct((B, HP), jnp.float32),
                   jax.ShapeDtypeStruct((N, HP), jnp.float32)),
        input_output_aliases={5: 0},       # out_prev buffer reused for the accumulator output
        compiler_params=_COMPILER_PARAMS,
    )(h, valid_col, mask_bn, wg, bg, out_prev)


# ------------------------------ JAX glue ---------------------------------- #

def build_adjacency(edge_index, edge_weight, N):
    """Dense A + I built ONCE; per-layer valid masking / gcn_norm happens inside the kernel."""
    src = edge_index[0]
    dst = edge_index[1]
    A = jnp.zeros((N, N), jnp.float32).at[dst, src].add(edge_weight)   # A[i, j] = w(j -> i)
    return A + jnp.eye(N, dtype=jnp.float32)                           # self loops (fill = 1)


def topk_keep(score, batch, valid, ratio, B):
    """Per-graph top-k (k = ceil(ratio * n_g)) selection, returned as a float keep-mask."""
    N = score.shape[0]
    vb = valid > 0
    s = jnp.where(vb, score, -jnp.inf)
    idx = jnp.arange(N)
    same_graph = batch[:, None] == batch[None, :]
    both_valid = vb[:, None] & vb[None, :]
    higher = (s[None, :] > s[:, None]) | ((s[None, :] == s[:, None]) & (idx[None, :] < idx[:, None]))
    rank = jnp.sum(same_graph & both_valid & higher, axis=1)
    counts = jnp.sum((batch[:, None] == jnp.arange(B)[None, :]) & vb[:, None], axis=0)   # [B]
    k = jnp.ceil(ratio * counts).astype(jnp.int32)
    keep = vb & (rank < k[batch])
    return keep.astype(jnp.float32)


def graph_conv_encoder_forward(bow, edge_index, edge_attr, batch, params, *,
                               num_graphs, pooling_ratio, n_hidden_layers,
                               hidden, hidden_pad):
    N = bow.shape[0]
    score_col = hidden        # spare lane of the padded activation carrying the TopK score

    # edge_attr.float().mean(dim=1)
    edge_weight = edge_attr.astype(jnp.float32).mean(axis=1)            # [E]
    A_raw = build_adjacency(edge_index, edge_weight, N)                 # hoisted out of the loop

    # ST embedding (approx): mean-of-token-embeddings as BOW @ E (Pallas matmul, lane-dense out)
    x = st_embed(bow, params["embed"])                                  # [N, HP]

    valid = jnp.ones((N,), jnp.float32)
    base_mask = (batch[None, :] == jnp.arange(num_graphs)[:, None]).astype(jnp.float32)  # [B, N]
    out = jnp.zeros((num_graphs, hidden_pad), jnp.float32)

    # input GCL/GPL + attpool, then (n_hidden_layers - 1) hidden GCL/GPL each with out += attpool
    for i in range(n_hidden_layers):
        h = gcn_pool_score(A_raw, x, valid[:, None],
                           params["gcl_w"][i], params["gcl_b"][i], params["pool_w"][i],
                           score_col=score_col)                          # [N, HP] (+ score lane)
        score = h[:, score_col]                                          # [N]
        valid = valid * topk_keep(score, batch, valid, pooling_ratio, num_graphs)
        mask_bn = base_mask * valid[None, :]                             # [B, N]
        out, x = topk_attn_pool(h, valid[:, None], mask_bn,
                                params["att_w"], params["att_b"], out,
                                score_col=score_col)                     # out accumulated in-kernel

    return out[:, :hidden]                                               # [B, hidden]


# ------------------------------ parameters --------------------------------- #

def init_params(key, vocab_size, rnn_hidden, hidden, n_hidden_layers, hidden_pad):
    keys = jax.random.split(key, 2 + 3 * n_hidden_layers)

    def pad_cols(a, width):
        return jnp.pad(a, ((0, 0), (0, width - a.shape[1])))

    def pad_both(a, rows, cols):
        return jnp.pad(a, ((0, rows - a.shape[0]), (0, cols - a.shape[1])))

    p = {}
    emb = jax.random.normal(keys[0], (vocab_size, rnn_hidden), jnp.float32) * 0.1
    p["embed"] = pad_cols(emb, hidden_pad)                               # [V, HP]

    gcl_w, gcl_b, pool_w = [], [], []
    in_dims = [rnn_hidden] + [hidden] * (n_hidden_layers - 1)
    for i in range(n_hidden_layers):
        kw, kb, kp = keys[1 + 3 * i], keys[2 + 3 * i], keys[3 + 3 * i]
        scale = 1.0 / math.sqrt(in_dims[i])
        w = jax.random.normal(kw, (in_dims[i], hidden), jnp.float32) * scale
        b = jax.random.normal(kb, (1, hidden), jnp.float32) * 0.01
        pw = jax.random.normal(kp, (hidden,), jnp.float32)
        pw = pw / jnp.linalg.norm(pw)                                    # score = x @ w / ||w||
        gcl_w.append(pad_both(w, hidden_pad, hidden_pad))                # [HP, HP]
        gcl_b.append(pad_cols(b, hidden_pad))                            # [1, HP]
        pool_w.append(pad_cols(pw[None, :], hidden_pad))                 # [1, HP]
    p["gcl_w"], p["gcl_b"], p["pool_w"] = gcl_w, gcl_b, pool_w

    aw = jax.random.normal(keys[1 + 3 * n_hidden_layers], (hidden,), jnp.float32) * (1.0 / math.sqrt(hidden))
    p["att_w"] = pad_cols(aw[None, :], hidden_pad)                       # [1, HP]
    p["att_b"] = jnp.zeros((1, 1), jnp.float32)
    return p


def tokens_to_bow(tokens, vocab_size, pad_idx):
    onehot = jax.nn.one_hot(tokens, vocab_size, dtype=jnp.float32)       # [N, L, V]
    nonpad = (tokens != pad_idx).astype(jnp.float32)                     # [N, L]
    counts = jnp.einsum("nlv,nl->nv", onehot, nonpad)
    denom = jnp.maximum(nonpad.sum(axis=1, keepdims=True), 1.0)
    return counts / denom


# --------------------------------- main ------------------------------------ #

if __name__ == "__main__":
    # config (small, consistent with the module)
    VOCAB = 64
    PAD_IDX = 0
    RNN_HIDDEN = 32          # config.rnn.hidden_size
    HIDDEN = 32              # config.hidden_size
    HIDDEN_PAD = 128         # internal lane-dense padding of the feature dimension
    N_HIDDEN_LAYERS = 3      # config.n_hidden_layers
    POOL_RATIO = 0.8         # config.pooling_ratio

    N_NODES = 64
    N_EDGES = 128
    SEQ_LEN = 8
    N_GRAPHS = 2

    key = jax.random.PRNGKey(0)
    k_tok, k_ei, k_ea, k_par = jax.random.split(key, 4)

    tokens = jax.random.randint(k_tok, (N_NODES, SEQ_LEN), 1, VOCAB)
    tokens = tokens.at[:, -2:].set(PAD_IDX)                              # some padding
    edge_index = jax.random.randint(k_ei, (2, N_EDGES), 0, N_NODES)
    edge_attr = jax.random.uniform(k_ea, (N_EDGES, 3), jnp.float32)
    batch = (jnp.arange(N_NODES) >= N_NODES // 2).astype(jnp.int32)      # 2 graphs of 32 nodes

    params = init_params(k_par, VOCAB, RNN_HIDDEN, HIDDEN, N_HIDDEN_LAYERS, HIDDEN_PAD)
    bow = tokens_to_bow(tokens, VOCAB, PAD_IDX)

    forward = jax.jit(functools.partial(
        graph_conv_encoder_forward,
        num_graphs=N_GRAPHS, pooling_ratio=POOL_RATIO, n_hidden_layers=N_HIDDEN_LAYERS,
        hidden=HIDDEN, hidden_pad=HIDDEN_PAD))

    out = forward(bow, edge_index, edge_attr, batch, params)
    out = jax.block_until_ready(out)

    assert out.shape == (N_GRAPHS, HIDDEN)
    assert bool(jnp.all(jnp.isfinite(out)))
    print("KERNEL_OK")
</pallas_src>

<mosaic_0001>
module attributes {stable_mosaic.version = 11 : i64} {
  func.func private @main(%arg0: i32) attributes {dimension_semantics = [#tpu.dimension_semantics<core_parallel>], iteration_bounds = array<i64: 2>, tpu.core_type = #tpu.core_type<sc_scalar_subcore>, window_params = []} {
    return
  }
}

module attributes {stable_mosaic.version = 11 : i64} {
  func.func private @main(%arg0: i32) attributes {dimension_semantics = [#tpu.dimension_semantics<core_parallel>], iteration_bounds = array<i64: 2>, tpu.core_type = #tpu.core_type<sc_scalar_subcore>, window_params = []} {
    return
  }
}

module attributes {stable_mosaic.version = 11 : i64} {
  func.func @st_embed_kernel(%arg0: i32, %arg1: memref<64x64xf32, #tpu.memory_space<vmem>>, %arg2: memref<64x128xf32, #tpu.memory_space<vmem>>, %arg3: memref<64x128xf32, #tpu.memory_space<vmem>>) attributes {dimension_semantics = [#tpu.dimension_semantics<arbitrary>], iteration_bounds = array<i64: 1>, scalar_prefetch = 0 : i64, scratch_operands = 0 : i64, tpu.core_type = #tpu.core_type<tc>, window_params = [{pipeline_mode = #tpu.pipeline_mode<synchronous>, transform_indices = @transform_0, window_bounds = array<i64: 64, 64>}, {pipeline_mode = #tpu.pipeline_mode<synchronous>, transform_indices = @transform_1, window_bounds = array<i64: 64, 128>}, {pipeline_mode = #tpu.pipeline_mode<synchronous>, transform_indices = @transform_2, window_bounds = array<i64: 64, 128>}]} {
    %c0 = arith.constant 0 : index
    %c0_0 = arith.constant 0 : index
    %0 = vector.load %arg1[%c0, %c0_0] : memref<64x64xf32, #tpu.memory_space<vmem>>, vector<64x64xf32>
    %1 = arith.truncf %0 : vector<64x64xf32> to vector<64x64xbf16>
    %c0_1 = arith.constant 0 : index
    %c0_2 = arith.constant 0 : index
    %2 = vector.load %arg2[%c0_1, %c0_2] : memref<64x128xf32, #tpu.memory_space<vmem>>, vector<64x128xf32>
    %3 = arith.truncf %2 : vector<64x128xf32> to vector<64x128xbf16>
    %cst = arith.constant dense<0.000000e+00> : vector<64x128xf32>
    %4 = tpu.matmul %1, %3, %cst {dimension_numbers = #tpu.dot_dimension_numbers<[1], [0], [0], [1], [0, 0, 1, 1], [], []>} : vector<64x64xbf16>, vector<64x128xbf16>, vector<64x128xf32> -> vector<64x128xf32>
    %c0_3 = arith.constant 0 : index
    %c0_4 = arith.constant 0 : index
    %5 = vector.load %arg3[%c0_3, %c0_4] : memref<64x128xf32, #tpu.memory_space<vmem>>, vector<64x128xf32>
    tpu.vector_store %arg3[%c0_3, %c0_4], %4 {strides = array<i32>} : memref<64x128xf32, #tpu.memory_space<vmem>>, vector<64x128xf32>,
    return
  }
  func.func @transform_0(%arg0: i32) -> (i32, i32) {
    %c0_i32 = arith.constant 0 : i32
    %c0_i32_0 = arith.constant 0 : i32
    %c0_i32_1 = arith.constant 0 : i32
    return %c0_i32, %c0_i32_0 : i32, i32
  }
  func.func @transform_1(%arg0: i32) -> (i32, i32) {
    %c0_i32 = arith.constant 0 : i32
    %c0_i32_0 = arith.constant 0 : i32
    %c0_i32_1 = arith.constant 0 : i32
    return %c0_i32, %c0_i32_0 : i32, i32
  }
  func.func @transform_2(%arg0: i32) -> (i32, i32) {
    %c0_i32 = arith.constant 0 : i32
    %c0_i32_0 = arith.constant 0 : i32
    %c0_i32_1 = arith.constant 0 : i32
    return %c0_i32, %c0_i32_0 : i32, i32
  }
}

module attributes {stable_mosaic.version = 11 : i64} {
  func.func @gcn_pool_score_kernel(%arg0: i32, %arg1: memref<64x64xf32, #tpu.memory_space<vmem>>, %arg2: memref<64x128xf32, #tpu.memory_space<vmem>>, %arg3: memref<64x1xf32, #tpu.memory_space<vmem>>, %arg4: memref<128x128xf32, #tpu.memory_space<vmem>>, %arg5: memref<1x128xf32, #tpu.memory_space<vmem>>, %arg6: memref<1x128xf32, #tpu.memory_space<vmem>>, %arg7: memref<64x128xf32, #tpu.memory_space<vmem>>) attributes {dimension_semantics = [#tpu.dimension_semantics<arbitrary>], iteration_bounds = array<i64: 1>, scalar_prefetch = 0 : i64, scratch_operands = 0 : i64, tpu.core_type = #tpu.core_type<tc>, window_params = [{pipeline_mode = #tpu.pipeline_mode<synchronous>, transform_indices = @transform_0, window_bounds = array<i64: 64, 64>}, {pipeline_mode = #tpu.pipeline_mode<synchronous>, transform_indices = @transform_1, window_bounds = array<i64: 64, 128>}, {pipeline_mode = #tpu.pipeline_mode<synchronous>, transform_indices = @transform_2, window_bounds = array<i64: 64, 1>}, {pipeline_mode = #tpu.pipeline_mode<synchronous>, transform_indices = @transform_3, window_bounds = array<i64: 128, 128>}, {pipeline_mode = #tpu.pipeline_mode<synchronous>, transform_indices = @transform_4, window_bounds = array<i64: 1, 128>}, {pipeline_mode = #tpu.pipeline_mode<synchronous>, transform_indices = @transform_5, window_bounds = array<i64: 1, 128>}, {pipeline_mode = #tpu.pipeline_mode<synchronous>, transform_indices = @transform_6, window_bounds = array<i64: 64, 128>}]} {
    %c0 = arith.constant 0 : index
    %c0_0 = arith.constant 0 : index
    %0 = vector.load %arg1[%c0, %c0_0] : memref<64x64xf32, #tpu.memory_space<vmem>>, vector<64x64xf32>
    %c0_1 = arith.constant 0 : index
    %c0_2 = arith.constant 0 : index
    %1 = vector.load %arg3[%c0_1, %c0_2] : memref<64x1xf32, #tpu.memory_space<vmem>>, vector<64x1xf32>
    %cst = arith.constant dense<0.000000e+00> : vector<64x1xf32>
    %2 = tpu.matmul %0, %1, %cst {dimension_numbers = #tpu.dot_dimension_numbers<[1], [0], [0], [1], [0, 0, 1, 1], [], []>} : vector<64x64xf32>, vector<64x1xf32>, vector<64x1xf32> -> vector<64x1xf32>
    %3 = arith.mulf %1, %2 : vector<64x1xf32>
    %cst_3 = arith.constant 0.000000e+00 : f32
    %4 = vector.broadcast %cst_3 : f32 to vector<64x1xf32>
    %5 = arith.cmpf ogt, %3, %4 : vector<64x1xf32>
    %cst_4 = arith.constant 9.99999996E-13 : f32
    %6 = vector.broadcast %cst_4 : f32 to vector<64x1xf32>
    %7 = arith.maximumf %3, %6 : vector<64x1xf32>
    %8 = math.rsqrt %7 : vector<64x1xf32>
    %cst_5 = arith.constant 0.000000e+00 : f32
    %9 = vector.broadcast %cst_5 : f32 to vector<64x1xf32>
    %10 = arith.select %5, %8, %9 : vector<64x1xi1>, vector<64x1xf32>
    %c0_6 = arith.constant 0 : index
    %c0_7 = arith.constant 0 : index
    %11 = vector.load %arg2[%c0_6, %c0_7] : memref<64x128xf32, #tpu.memory_space<vmem>>, vector<64x128xf32>
    %12 = arith.truncf %11 : vector<64x128xf32> to vector<64x128xbf16>
    %c0_8 = arith.constant 0 : index
    %c0_9 = arith.constant 0 : index
    %13 = vector.load %arg4[%c0_8, %c0_9] : memref<128x128xf32, #tpu.memory_space<vmem>>, vector<128x128xf32>
    %14 = arith.truncf %13 : vector<128x128xf32> to vector<128x128xbf16>
    %cst_10 = arith.constant dense<0.000000e+00> : vector<64x128xf32>
    %15 = tpu.matmul %12, %14, %cst_10 {dimension_numbers = #tpu.dot_dimension_numbers<[1], [0], [0], [1], [0, 0, 1, 1], [], []>} : vector<64x128xbf16>, vector<128x128xbf16>, vector<64x128xf32> -> vector<64x128xf32>
    %16 = arith.truncf %0 : vector<64x64xf32> to vector<64x64xbf16>
    %17 = vector.broadcast %10 : vector<64x1xf32> to vector<64x128xf32>
    %18 = arith.mulf %17, %15 : vector<64x128xf32>
    %19 = arith.truncf %18 : vector<64x128xf32> to vector<64x128xbf16>
    %cst_11 = arith.constant dense<0.000000e+00> : vector<64x128xf32>
    %20 = tpu.matmul %16, %19, %cst_11 {dimension_numbers = #tpu.dot_dimension_numbers<[1], [0], [0], [1], [0, 0, 1, 1], [], []>} : vector<64x64xbf16>, vector<64x128xbf16>, vector<64x128xf32> -> vector<64x128xf32>
    %21 = vector.broadcast %10 : vector<64x1xf32> to vector<64x128xf32>
    %22 = arith.mulf %21, %20 : vector<64x128xf32>
    %c0_12 = arith.constant 0 : index
    %c0_13 = arith.constant 0 : index
    %23 = vector.load %arg5[%c0_12, %c0_13] : memref<1x128xf32, #tpu.memory_space<vmem>>, vector<1x128xf32>
    %24 = vector.broadcast %23 : vector<1x128xf32> to vector<64x128xf32>
    %25 = arith.addf %22, %24 : vector<64x128xf32>
    %cst_14 = arith.constant 0.000000e+00 : f32
    %26 = vector.broadcast %cst_14 : f32 to vector<64x128xf32>
    %27 = arith.maximumf %25, %26 : vector<64x128xf32>
    %c0_15 = arith.constant 0 : index
    %c0_16 = arith.constant 0 : index
    %28 = vector.load %arg6[%c0_15, %c0_16] : memref<1x128xf32, #tpu.memory_space<vmem>>, vector<1x128xf32>
    %29 = vector.broadcast %28 : vector<1x128xf32> to vector<64x128xf32>
    %30 = arith.mulf %27, %29 : vector<64x128xf32>
    %cst_17 = arith.constant dense<0.000000e+00> : vector<64xf32>
    %31 = vector.multi_reduction <add>, %30, %cst_17 [1] : vector<64x128xf32> to vector<64xf32>
    %32 = vector.shape_cast %31 : vector<64xf32> to vector<64x1xf32>
    %33 = tpu.iota {dimensions = array<i32: 1>} : vector<64x128xi32>
    %c32_i32 = arith.constant 32 : i32
    %34 = vector.broadcast %c32_i32 : i32 to vector<64x128xi32>
    %35 = arith.cmpi eq, %33, %34 : vector<64x128xi32>
    %36 = vector.shape_cast %32 : vector<64x1xf32> to vector<64x1xf32>
    %37 = vector.broadcast %36 : vector<64x1xf32> to vector<64x128xf32>
    %38 = arith.select %35, %37, %27 : vector<64x128xi1>, vector<64x128xf32>
    %c0_18 = arith.constant 0 : index
    %c0_19 = arith.constant 0 : index
    %39 = vector.load %arg7[%c0_18, %c0_19] : memref<64x128xf32, #tpu.memory_space<vmem>>, vector<64x128xf32>
    tpu.vector_store %arg7[%c0_18, %c0_19], %38 {strides = array<i32>} : memref<64x128xf32, #tpu.memory_space<vmem>>, vector<64x128xf32>,
    return
  }
  func.func @transform_0(%arg0: i32) -> (i32, i32) {
    %c0_i32 = arith.constant 0 : i32
    %c0_i32_0 = arith.constant 0 : i32
    %c0_i32_1 = arith.constant 0 : i32
    return %c0_i32, %c0_i32_0 : i32, i32
  }
  func.func @transform_1(%arg0: i32) -> (i32, i32) {
    %c0_i32 = arith.constant 0 : i32
    %c0_i32_0 = arith.constant 0 : i32
    %c0_i32_1 = arith.constant 0 : i32
    return %c0_i32, %c0_i32_0 : i32, i32
  }
  func.func @transform_2(%arg0: i32) -> (i32, i32) {
    %c0_i32 = arith.constant 0 : i32
    %c0_i32_0 = arith.constant 0 : i32
    %c0_i32_1 = arith.constant 0 : i32
    return %c0_i32, %c0_i32_0 : i32, i32
  }
  func.func @transform_3(%arg0: i32) -> (i32, i32) {
    %c0_i32 = arith.constant 0 : i32
    %c0_i32_0 = arith.constant 0 : i32
    %c0_i32_1 = arith.constant 0 : i32
    return %c0_i32, %c0_i32_0 : i32, i32
  }
  func.func @transform_4(%arg0: i32) -> (i32, i32) {
    %c0_i32 = arith.constant 0 : i32
    %c0_i32_0 = arith.constant 0 : i32
    %c0_i32_1 = arith.constant 0 : i32
    return %c0_i32, %c0_i32_0 : i32, i32
  }
  func.func @transform_5(%arg0: i32) -> (i32, i32) {
    %c0_i32 = arith.constant 0 : i32
    %c0_i32_0 = arith.constant 0 : i32
    %c0_i32_1 = arith.constant 0 : i32
    return %c0_i32, %c0_i32_0 : i32, i32
  }
  func.func @transform_6(%arg0: i32) -> (i32, i32) {
    %c0_i32 = arith.constant 0 : i32
    %c0_i32_0 = arith.constant 0 : i32
    %c0_i32_1 = arith.constant 0 : i32
    return %c0_i32, %c0_i32_0 : i32, i32
  }
}

module attributes {stable_mosaic.version = 11 : i64} {
  func.func @topk_attn_pool_kernel(%arg0: i32, %arg1: memref<64x128xf32, #tpu.memory_space<vmem>>, %arg2: memref<64x1xf32, #tpu.memory_space<vmem>>, %arg3: memref<2x64xf32, #tpu.memory_space<vmem>>, %arg4: memref<1x128xf32, #tpu.memory_space<vmem>>, %arg5: memref<1x1xf32, #tpu.memory_space<vmem>>, %arg6: memref<2x128xf32, #tpu.memory_space<vmem>>, %arg7: memref<2x128xf32, #tpu.memory_space<vmem>>, %arg8: memref<64x128xf32, #tpu.memory_space<vmem>>) attributes {dimension_semantics = [#tpu.dimension_semantics<arbitrary>], iteration_bounds = array<i64: 1>, scalar_prefetch = 0 : i64, scratch_operands = 0 : i64, tpu.core_type = #tpu.core_type<tc>, window_params = [{pipeline_mode = #tpu.pipeline_mode<synchronous>, transform_indices = @transform_0, window_bounds = array<i64: 64, 128>}, {pipeline_mode = #tpu.pipeline_mode<synchronous>, transform_indices = @transform_1, window_bounds = array<i64: 64, 1>}, {pipeline_mode = #tpu.pipeline_mode<synchronous>, transform_indices = @transform_2, window_bounds = array<i64: 2, 64>}, {pipeline_mode = #tpu.pipeline_mode<synchronous>, transform_indices = @transform_3, window_bounds = array<i64: 1, 128>}, {pipeline_mode = #tpu.pipeline_mode<synchronous>, transform_indices = @transform_4, window_bounds = array<i64: 1, 1>}, {pipeline_mode = #tpu.pipeline_mode<synchronous>, transform_indices = @transform_5, window_bounds = array<i64: 2, 128>}, {pipeline_mode = #tpu.pipeline_mode<synchronous>, transform_indices = @transform_6, window_bounds = array<i64: 2, 128>}, {pipeline_mode = #tpu.pipeline_mode<synchronous>, transform_indices = @transform_7, window_bounds = array<i64: 64, 128>}]} {
    %c0 = arith.constant 0 : index
    %c0_0 = arith.constant 0 : index
    %0 = vector.load %arg1[%c0, %c0_0] : memref<64x128xf32, #tpu.memory_space<vmem>>, vector<64x128xf32>
    %1 = tpu.iota {dimensions = array<i32: 1>} : vector<64x128xi32>
    %c32_i32 = arith.constant 32 : i32
    %2 = vector.broadcast %c32_i32 : i32 to vector<64x128xi32>
    %3 = arith.cmpi eq, %1, %2 : vector<64x128xi32>
    %cst = arith.constant 0.000000e+00 : f32
    %4 = vector.broadcast %cst : f32 to vector<64x128xf32>
    %5 = arith.select %3, %0, %4 : vector<64x128xi1>, vector<64x128xf32>
    %cst_1 = arith.constant dense<0.000000e+00> : vector<64xf32>
    %6 = vector.multi_reduction <add>, %5, %cst_1 [1] : vector<64x128xf32> to vector<64xf32>
    %7 = vector.shape_cast %6 : vector<64xf32> to vector<64x1xf32>
    %8 = math.tanh %7 : vector<64x1xf32>
    %9 = vector.broadcast %8 : vector<64x1xf32> to vector<64x128xf32>
    %10 = arith.mulf %0, %9 : vector<64x128xf32>
    %c0_2 = arith.constant 0 : index
    %c0_3 = arith.constant 0 : index
    %11 = vector.load %arg2[%c0_2, %c0_3] : memref<64x1xf32, #tpu.memory_space<vmem>>, vector<64x1xf32>
    %12 = vector.broadcast %11 : vector<64x1xf32> to vector<64x128xf32>
    %13 = arith.mulf %10, %12 : vector<64x128xf32>
    %c0_4 = arith.constant 0 : index
    %c0_5 = arith.constant 0 : index
    %14 = vector.load %arg4[%c0_4, %c0_5] : memref<1x128xf32, #tpu.memory_space<vmem>>, vector<1x128xf32>
    %cst_6 = arith.constant dense<0.000000e+00> : vector<1x64xf32>
    %15 = tpu.matmul %14, %13, %cst_6 {dimension_numbers = #tpu.dot_dimension_numbers<[1], [1], [0], [0], [0, 0, 1, 0], [], []>} : vector<1x128xf32>, vector<64x128xf32>, vector<1x64xf32> -> vector<1x64xf32>
    %c0_7 = arith.constant 0 : index
    %c0_8 = arith.constant 0 : index
    %16 = vector.load %arg5[%c0_7, %c0_8] : memref<1x1xf32, #tpu.memory_space<vmem>>, vector<1x1xf32>
    %17 = vector.broadcast %16 : vector<1x1xf32> to vector<1x64xf32>
    %18 = arith.addf %15, %17 : vector<1x64xf32>
    %c0_9 = arith.constant 0 : index
    %c0_10 = arith.constant 0 : index
    %19 = vector.load %arg3[%c0_9, %c0_10] : memref<2x64xf32, #tpu.memory_space<vmem>>, vector<2x64xf32>
    %cst_11 = arith.constant 0.000000e+00 : f32
    %20 = vector.broadcast %cst_11 : f32 to vector<2x64xf32>
    %21 = arith.cmpf ogt, %19, %20 : vector<2x64xf32>
    %cst_12 = arith.constant -1.000000e+30 : f32
    %22 = vector.shape_cast %18 : vector<1x64xf32> to vector<1x64xf32>
    %23 = vector.broadcast %22 : vector<1x64xf32> to vector<2x64xf32>
    %24 = vector.broadcast %cst_12 : f32 to vector<2x64xf32>
    %25 = arith.select %21, %23, %24 : vector<2x64xi1>, vector<2x64xf32>
    %cst_13 = arith.constant dense<0xFF800000> : vector<2xf32>
    %26 = vector.multi_reduction <maximumf>, %25, %cst_13 [1] : vector<2x64xf32> to vector<2xf32>
    %27 = vector.shape_cast %26 : vector<2xf32> to vector<2x1xf32>
    %28 = vector.broadcast %27 : vector<2x1xf32> to vector<2x64xf32>
    %29 = arith.subf %25, %28 : vector<2x64xf32>
    %30 = math.exp %29 : vector<2x64xf32>
    %31 = arith.mulf %30, %19 : vector<2x64xf32>
    %cst_14 = arith.constant dense<0.000000e+00> : vector<2xf32>
    %32 = vector.multi_reduction <add>, %31, %cst_14 [1] : vector<2x64xf32> to vector<2xf32>
    %33 = vector.shape_cast %32 : vector<2xf32> to vector<2x1xf32>
    %cst_15 = arith.constant 0.000000e+00 : f32
    %34 = vector.broadcast %cst_15 : f32 to vector<2x1xf32>
    %35 = arith.cmpf ogt, %33, %34 : vector<2x1xf32>
    %cst_16 = arith.constant 1.000000e-30 : f32
    %36 = vector.broadcast %cst_16 : f32 to vector<2x1xf32>
    %37 = arith.maximumf %33, %36 : vector<2x1xf32>
    %38 = tpu.reciprocal %37 {approx = true} : vector<2x1xf32> -> vector<2x1xf32>
    %cst_17 = arith.constant 0.000000e+00 : f32
    %39 = vector.broadcast %cst_17 : f32 to vector<2x1xf32>
    %40 = arith.select %35, %38, %39 : vector<2x1xi1>, vector<2x1xf32>
    %41 = vector.broadcast %40 : vector<2x1xf32> to vector<2x64xf32>
    %42 = arith.mulf %31, %41 : vector<2x64xf32>
    %cst_18 = arith.constant dense<0.000000e+00> : vector<2x128xf32>
    %43 = tpu.matmul %42, %13, %cst_18 {dimension_numbers = #tpu.dot_dimension_numbers<[1], [0], [0], [1], [0, 0, 1, 1], [], []>} : vector<2x64xf32>, vector<64x128xf32>, vector<2x128xf32> -> vector<2x128xf32>
    %c0_19 = arith.constant 0 : index
    %c0_20 = arith.constant 0 : index
    %44 = vector.load %arg6[%c0_19, %c0_20] : memref<2x128xf32, #tpu.memory_space<vmem>>, vector<2x128xf32>
    %45 = arith.addf %44, %43 : vector<2x128xf32>
    %c0_21 = arith.constant 0 : index
    %c0_22 = arith.constant 0 : index
    %46 = vector.load %arg7[%c0_21, %c0_22] : memref<2x128xf32, #tpu.memory_space<vmem>>, vector<2x128xf32>
    tpu.vector_store %arg7[%c0_21, %c0_22], %45 {strides = array<i32>} : memref<2x128xf32, #tpu.memory_space<vmem>>, vector<2x128xf32>,
    %c0_23 = arith.constant 0 : index
    %c0_24 = arith.constant 0 : index
    %47 = vector.load %arg8[%c0_23, %c0_24] : memref<64x128xf32, #tpu.memory_space<vmem>>, vector<64x128xf32>
    tpu.vector_store %arg8[%c0_23, %c0_24], %13 {strides = array<i32>} : memref<64x128xf32, #tpu.memory_space<vmem>>, vector<64x128xf32>,
    return
  }
  func.func @transform_0(%arg0: i32) -> (i32, i32) {
    %c0_i32 = arith.constant 0 : i32
    %c0_i32_0 = arith.constant 0 : i32
    %c0_i32_1 = arith.constant 0 : i32
    return %c0_i32, %c0_i32_0 : i32, i32
  }
  func.func @transform_1(%arg0: i32) -> (i32, i32) {
    %c0_i32 = arith.constant 0 : i32
    %c0_i32_0 = arith.constant 0 : i32
    %c0_i32_1 = arith.constant 0 : i32
    return %c0_i32, %c0_i32_0 : i32, i32
  }
  func.func @transform_2(%arg0: i32) -> (i32, i32) {
    %c0_i32 = arith.constant 0 : i32
    %c0_i32_0 = arith.constant 0 : i32
    %c0_i32_1 = arith.constant 0 : i32
    return %c0_i32, %c0_i32_0 : i32, i32
  }
  func.func @transform_3(%arg0: i32) -> (i32, i32) {
    %c0_i32 = arith.constant 0 : i32
    %c0_i32_0 = arith.constant 0 : i32
    %c0_i32_1 = arith.constant 0 : i32
    return %c0_i32, %c0_i32_0 : i32, i32
  }
  func.func @transform_4(%arg0: i32) -> (i32, i32) {
    %c0_i32 = arith.constant 0 : i32
    %c0_i32_0 = arith.constant 0 : i32
    %c0_i32_1 = arith.constant 0 : i32
    return %c0_i32, %c0_i32_0 : i32, i32
  }
  func.func @transform_5(%arg0: i32) -> (i32, i32) {
    %c0_i32 = arith.constant 0 : i32
    %c0_i32_0 = arith.constant 0 : i32
    %c0_i32_1 = arith.constant 0 : i32
    return %c0_i32, %c0_i32_0 : i32, i32
  }
  func.func @transform_6(%arg0: i32) -> (i32, i32) {
    %c0_i32 = arith.constant 0 : i32
    %c0_i32_0 = arith.constant 0 : i32
    %c0_i32_1 = arith.constant 0 : i32
    return %c0_i32, %c0_i32_0 : i32, i32
  }
  func.func @transform_7(%arg0: i32) -> (i32, i32) {
    %c0_i32 = arith.constant 0 : i32
    %c0_i32_0 = arith.constant 0 : i32
    %c0_i32_1 = arith.constant 0 : i32
    return %c0_i32, %c0_i32_0 : i32, i32
  }
}

module attributes {stable_mosaic.version = 11 : i64} {
  func.func @topk_attn_pool_kernel(%arg0: i32, %arg1: memref<64x128xf32, #tpu.memory_space<vmem>>, %arg2: memref<64x1xf32, #tpu.memory_space<vmem>>, %arg3: memref<2x64xf32, #tpu.memory_space<vmem>>, %arg4: memref<1x128xf32, #tpu.memory_space<vmem>>, %arg5: memref<1x1xf32, #tpu.memory_space<vmem>>, %arg6: memref<2x128xf32, #tpu.memory_space<vmem>>, %arg7: memref<2x128xf32, #tpu.memory_space<vmem>>, %arg8: memref<64x128xf32, #tpu.memory_space<vmem>>) attributes {dimension_semantics = [#tpu.dimension_semantics<arbitrary>], iteration_bounds = array<i64: 1>, scalar_prefetch = 0 : i64, scratch_operands = 0 : i64, tpu.core_type = #tpu.core_type<tc>, window_params = [{pipeline_mode = #tpu.pipeline_mode<synchronous>, transform_indices = @transform_0, window_bounds = array<i64: 64, 128>}, {pipeline_mode = #tpu.pipeline_mode<synchronous>, transform_indices = @transform_1, window_bounds = array<i64: 64, 1>}, {pipeline_mode = #tpu.pipeline_mode<synchronous>, transform_indices = @transform_2, window_bounds = array<i64: 2, 64>}, {pipeline_mode = #tpu.pipeline_mode<synchronous>, transform_indices = @transform_3, window_bounds = array<i64: 1, 128>}, {pipeline_mode = #tpu.pipeline_mode<synchronous>, transform_indices = @transform_4, window_bounds = array<i64: 1, 1>}, {pipeline_mode = #tpu.pipeline_mode<synchronous>, transform_indices = @transform_5, window_bounds = array<i64: 2, 128>}, {pipeline_mode = #tpu.pipeline_mode<synchronous>, transform_indices = @transform_6, window_bounds = array<i64: 2, 128>}, {pipeline_mode = #tpu.pipeline_mode<synchronous>, transform_indices = @transform_7, window_bounds = array<i64: 64, 128>}]} {
    %c0 = arith.constant 0 : index
    %c0_0 = arith.constant 0 : index
    %0 = vector.load %arg1[%c0, %c0_0] : memref<64x128xf32, #tpu.memory_space<vmem>>, vector<64x128xf32>
    %1 = tpu.iota {dimensions = array<i32: 1>} : vector<64x128xi32>
    %c32_i32 = arith.constant 32 : i32
    %2 = vector.broadcast %c32_i32 : i32 to vector<64x128xi32>
    %3 = arith.cmpi eq, %1, %2 : vector<64x128xi32>
    %cst = arith.constant 0.000000e+00 : f32
    %4 = vector.broadcast %cst : f32 to vector<64x128xf32>
    %5 = arith.select %3, %0, %4 : vector<64x128xi1>, vector<64x128xf32>
    %cst_1 = arith.constant dense<0.000000e+00> : vector<64xf32>
    %6 = vector.multi_reduction <add>, %5, %cst_1 [1] : vector<64x128xf32> to vector<64xf32>
    %7 = vector.shape_cast %6 : vector<64xf32> to vector<64x1xf32>
    %8 = math.tanh %7 : vector<64x1xf32>
    %9 = vector.broadcast %8 : vector<64x1xf32> to vector<64x128xf32>
    %10 = arith.mulf %0, %9 : vector<64x128xf32>
    %c0_2 = arith.constant 0 : index
    %c0_3 = arith.constant 0 : index
    %11 = vector.load %arg2[%c0_2, %c0_3] : memref<64x1xf32, #tpu.memory_space<vmem>>, vector<64x1xf32>
    %12 = vector.broadcast %11 : vector<64x1xf32> to vector<64x128xf32>
    %13 = arith.mulf %10, %12 : vector<64x128xf32>
    %c0_4 = arith.constant 0 : index
    %c0_5 = arith.constant 0 : index
    %14 = vector.load %arg4[%c0_4, %c0_5] : memref<1x128xf32, #tpu.memory_space<vmem>>, vector<1x128xf32>
    %cst_6 = arith.constant dense<0.000000e+00> : vector<1x64xf32>
    %15 = tpu.matmul %14, %13, %cst_6 {dimension_numbers = #tpu.dot_dimension_numbers<[1], [1], [0], [0], [0, 0, 1, 0], [], []>} : vector<1x128xf32>, vector<64x128xf32>, vector<1x64xf32> -> vector<1x64xf32>
    %c0_7 = arith.constant 0 : index
    %c0_8 = arith.constant 0 : index
    %16 = vector.load %arg5[%c0_7, %c0_8] : memref<1x1xf32, #tpu.memory_space<vmem>>, vector<1x1xf32>
    %17 = vector.broadcast %16 : vector<1x1xf32> to vector<1x64xf32>
    %18 = arith.addf %15, %17 : vector<1x64xf32>
    %c0_9 = arith.constant 0 : index
    %c0_10 = arith.constant 0 : index
    %19 = vector.load %arg3[%c0_9, %c0_10] : memref<2x64xf32, #tpu.memory_space<vmem>>, vector<2x64xf32>
    %cst_11 = arith.constant 0.000000e+00 : f32
    %20 = vector.broadcast %cst_11 : f32 to vector<2x64xf32>
    %21 = arith.cmpf ogt, %19, %20 : vector<2x64xf32>
    %cst_12 = arith.constant -1.000000e+30 : f32
    %22 = vector.shape_cast %18 : vector<1x64xf32> to vector<1x64xf32>
    %23 = vector.broadcast %22 : vector<1x64xf32> to vector<2x64xf32>
    %24 = vector.broadcast %cst_12 : f32 to vector<2x64xf32>
    %25 = arith.select %21, %23, %24 : vector<2x64xi1>, vector<2x64xf32>
    %cst_13 = arith.constant dense<0xFF800000> : vector<2xf32>
    %26 = vector.multi_reduction <maximumf>, %25, %cst_13 [1] : vector<2x64xf32> to vector<2xf32>
    %27 = vector.shape_cast %26 : vector<2xf32> to vector<2x1xf32>
    %28 = vector.broadcast %27 : vector<2x1xf32> to vector<2x64xf32>
    %29 = arith.subf %25, %28 : vector<2x64xf32>
    %30 = math.exp %29 : vector<2x64xf32>
    %31 = arith.mulf %30, %19 : vector<2x64xf32>
    %cst_14 = arith.constant dense<0.000000e+00> : vector<2xf32>
    %32 = vector.multi_reduction <add>, %31, %cst_14 [1] : vector<2x64xf32> to vector<2xf32>
    %33 = vector.shape_cast %32 : vector<2xf32> to vector<2x1xf32>
    %cst_15 = arith.constant 0.000000e+00 : f32
    %34 = vector.broadcast %cst_15 : f32 to vector<2x1xf32>
    %35 = arith.cmpf ogt, %33, %34 : vector<2x1xf32>
    %cst_16 = arith.constant 1.000000e-30 : f32
    %36 = vector.broadcast %cst_16 : f32 to vector<2x1xf32>
    %37 = arith.maximumf %33, %36 : vector<2x1xf32>
    %38 = tpu.reciprocal %37 {approx = true} : vector<2x1xf32> -> vector<2x1xf32>
    %cst_17 = arith.constant 0.000000e+00 : f32
    %39 = vector.broadcast %cst_17 : f32 to vector<2x1xf32>
    %40 = arith.select %35, %38, %39 : vector<2x1xi1>, vector<2x1xf32>
    %41 = vector.broadcast %40 : vector<2x1xf32> to vector<2x64xf32>
    %42 = arith.mulf %31, %41 : vector<2x64xf32>
    %cst_18 = arith.constant dense<0.000000e+00> : vector<2x128xf32>
    %43 = tpu.matmul %42, %13, %cst_18 {dimension_numbers = #tpu.dot_dimension_numbers<[1], [0], [0], [1], [0, 0, 1, 1], [], []>} : vector<2x64xf32>, vector<64x128xf32>, vector<2x128xf32> -> vector<2x128xf32>
    %c0_19 = arith.constant 0 : index
    %c0_20 = arith.constant 0 : index
    %44 = vector.load %arg6[%c0_19, %c0_20] : memref<2x128xf32, #tpu.memory_space<vmem>>, vector<2x128xf32>
    %45 = arith.addf %44, %43 : vector<2x128xf32>
    %c0_21 = arith.constant 0 : index
    %c0_22 = arith.constant 0 : index
    %46 = vector.load %arg7[%c0_21, %c0_22] : memref<2x128xf32, #tpu.memory_space<vmem>>, vector<2x128xf32>
    tpu.vector_store %arg7[%c0_21, %c0_22], %45 {strides = array<i32>} : memref<2x128xf32, #tpu.memory_space<vmem>>, vector<2x128xf32>,
    %c0_23 = arith.constant 0 : index
    %c0_24 = arith.constant 0 : index
    %47 = vector.load %arg8[%c0_23, %c0_24] : memref<64x128xf32, #tpu.memory_space<vmem>>, vector<64x128xf32>
    tpu.vector_store %arg8[%c0_23, %c0_24], %13 {strides = array<i32>} : memref<64x128xf32, #tpu.memory_space<vmem>>, vector<64x128xf32>,
    return
  }
  func.func @transform_0(%arg0: i32) -> (i32, i32) {
    %c0_i32 = arith.constant 0 : i32
    %c0_i32_0 = arith.constant 0 : i32
    %c0_i32_1 = arith.constant 0 : i32
    return %c0_i32, %c0_i32_0 : i32, i32
  }
  func.func @transform_1(%arg0: i32) -> (i32, i32) {
    %c0_i32 = arith.constant 0 : i32
    %c0_i32_0 = arith.constant 0 : i32
    %c0_i32_1 = arith.constant 0 : i32
    return %c0_i32, %c0_i32_0 : i32, i32
  }
  func.func @transform_2(%arg0: i32) -> (i32, i32) {
    %c0_i32 = arith.constant 0 : i32
    %c0_i32_0 = arith.constant 0 : i32
    %c0_i32_1 = arith.constant 0 : i32
    return %c0_i32, %c0_i32_0 : i32, i32
  }
  func.func @transform_3(%arg0: i32) -> (i32, i32) {
    %c0_i32 = arith.constant 0 : i32
    %c0_i32_0 = arith.constant 0 : i32
    %c0_i32_1 = arith.constant 0 : i32
    return %c0_i32, %c0_i32_0 : i32, i32
  }
  func.func @transform_4(%arg0: i32) -> (i32, i32) {
    %c0_i32 = arith.constant 0 : i32
    %c0_i32_0 = arith.constant 0 : i32
    %c0_i32_1 = arith.constant 0 : i32
    return %c0_i32, %c0_i32_0 : i32, i32
  }
  func.func @transform_5(%arg0: i32) -> (i32, i32) {
    %c0_i32 = arith.constant 0 : i32
    %c0_i32_0 = arith.constant 0 : i32
    %c0_i32_1 = arith.constant 0 : i32
    return %c0_i32, %c0_i32_0 : i32, i32
  }
  func.func @transform_6(%arg0: i32) -> (i32, i32) {
    %c0_i32 = arith.constant 0 : i32
    %c0_i32_0 = arith.constant 0 : i32
    %c0_i32_1 = arith.constant 0 : i32
    return %c0_i32, %c0_i32_0 : i32, i32
  }
  func.func @transform_7(%arg0: i32) -> (i32, i32) {
    %c0_i32 = arith.constant 0 : i32
    %c0_i32_0 = arith.constant 0 : i32
    %c0_i32_1 = arith.constant 0 : i32
    return %c0_i32, %c0_i32_0 : i32, i32
  }
}

</mosaic_0001>

<llo_original>
// kernel: graph_conv_encoder_forward.7
$region0: #{graph_conv_encoder_forward.7}
  #allocation0 [shape = 'u32[]', space=smem, size = 0x4, offset = 0x4, fixed_abs, tag = 'smem constant byte address 0x4 - core index']
  #allocation1 [shape = 'u32[144,128]{1,0:T(1,128)}', space=vmem, size = 0x12000, scoped, tag = 'internal scratch']
  %s0 = inlined_call_operand.vmem [shape: f32[64,64], index: 0, kind: input, shape index: {}]
  %s1 = inlined_call_operand.vmem [shape: f32[64,128], index: 1, kind: input, shape index: {}]
  %s2 = inlined_call_operand.vmem [shape: f32[64,128], index: 2, kind: output, shape index: {}]
  %s3 = sld [smem:[#allocation0]]
  $region18: #{graph_conv_encoder_forward.7} parent=0
    _
  %s5 = ssub.s32 1, %s3
  %s6 = scalar_select 0, %s5, %s3
  // Predicated region
  $region2: #{graph_conv_encoder_forward.7} parent=0 // pred_check
    _
  $region3: #{graph_conv_encoder_forward.7} parent=0 // pred_check_branch
    %8 = sbr.rel (0) target = $region5
  $region4: #{graph_conv_encoder_forward.7} parent=0 // pred_region
    _
  $region5: #{graph_conv_encoder_forward.7} parent=0 // pred_fallthru
    _
  // Predicated region
  $region6: #{graph_conv_encoder_forward.7} parent=0 // pred_check
    _
  $region7: #{graph_conv_encoder_forward.7} parent=0 // pred_check_branch
    %10 = sbr.rel (0) target = $region9
  $region8: #{graph_conv_encoder_forward.7} parent=0 // pred_region
    _
  $region9: #{graph_conv_encoder_forward.7} parent=0 // pred_fallthru
    _
  %v12 = vld [vmem:[%s0] sm:$0xff]
  %v13 = vld [vmem:[%s0 + $0x8] sm:$0xff]
  %v14 = vld [vmem:[%s0 + $0x10] sm:$0xff]
  %v15 = vld [vmem:[%s0 + $0x18] sm:$0xff]
  %v16 = vld [vmem:[%s0 + $0x20] sm:$0xff]
  %v17 = vld [vmem:[%s0 + $0x28] sm:$0xff]
  %v18 = vld [vmem:[%s0 + $0x30] sm:$0xff]
  %v19 = vld [vmem:[%s0 + $0x38] sm:$0xff]
  %v20 = vpack.c.bf16 %v13, %v12
  %v21 = vpack.c.bf16 %v15, %v14
  %v22 = vpack.c.bf16 %v17, %v16
  %v23 = vpack.c.bf16 %v19, %v18
  %v24 = vld [vmem:[%s1] sm:$0xff]
  %v25 = vld [vmem:[%s1 + $0x8] sm:$0xff]
  %v26 = vld [vmem:[%s1 + $0x10] sm:$0xff]
  %v27 = vld [vmem:[%s1 + $0x18] sm:$0xff]
  %v28 = vld [vmem:[%s1 + $0x20] sm:$0xff]
  %v29 = vld [vmem:[%s1 + $0x28] sm:$0xff]
  %v30 = vld [vmem:[%s1 + $0x30] sm:$0xff]
  %v31 = vld [vmem:[%s1 + $0x38] sm:$0xff]
  %v32 = vpack.c.bf16 %v25, %v24
  %v33 = vpack.c.bf16 %v27, %v26
  %v34 = vpack.c.bf16 %v29, %v28
  %v35 = vpack.c.bf16 %v31, %v30
  %vm36 = vcmask 523264
  %v38 = vsel %vm36, %v20, 0
  %v41 = vsel %vm36, %v21, 0
  %v44 = vsel %vm36, %v22, 0
  %v47 = vsel %vm36, %v23, 0
  %49 = vmatprep.subr.bf16.mxu0 0
  %50 = vmatpush1.bf16.msra.mxu0 %v32
  %51 = vmatprep.subr.bf16.mxu0 0
  %52 = vmatpush1.bf16.msra.mxu0 %v33
  %53 = vmatprep.subr.bf16.mxu0 0
  %54 = vmatpush1.bf16.msra.mxu0 %v34
  %55 = vmatprep.subr.bf16.mxu0 0
  %56 = vmatpush1.bf16.msra.mxu0 %v35
  %57 = vmatprep.subr.bf16.mxu0 0
  %58 = vmatpush1.bf16.msra.mxu0 0
  %59 = vmatprep.subr.bf16.mxu0 0
  %60 = vmatpush1.bf16.msra.mxu0 0
  %61 = vmatprep.subr.bf16.mxu0 0
  %62 = vmatpush1.bf16.msra.mxu0 0
  %63 = vmatprep.subr.bf16.mxu0 0
  %64 = vmatpush1.bf16.msra.mxu0 0
  %65 = vmatprep.subr.bf16.mxu0 0
  %66 = vmatpush1.bf16.msra.mxu0 0
  %67 = vmatprep.subr.bf16.mxu0 0
  %68 = vmatpush1.bf16.msra.mxu0 0
  %69 = vmatprep.subr.bf16.mxu0 0
  %70 = vmatpush1.bf16.msra.mxu0 0
  %71 = vmatprep.subr.bf16.mxu0 0
  %72 = vmatpush1.bf16.msra.mxu0 0
  %73 = vmatprep.subr.bf16.mxu0 0
  %74 = vmatpush1.bf16.msra.mxu0 0
  %75 = vmatprep.subr.bf16.mxu0 0
  %76 = vmatpush1.bf16.msra.mxu0 0
  %77 = vmatprep.subr.bf16.mxu0 0
  %78 = vmatpush1.bf16.msra.mxu0 0
  %79 = vmatprep.subr.bf16.mxu0 0
  %80 = vmatpush1.bf16.msra.mxu0 0
  %81 = vmatprep.mubr.bf16.mxu0 0
  %82 = vmatmul.mubr.bf16.gmra.mrb[0].mxu0 %v38
  %v83 = vpop.f32.mrb[0].mxu0
  %v84 = vadd.f32 0.0, %v83
  %v85 = vpop.f32.mrb[0].mxu0
  %v86 = vpop.f32.mrb[0].mxu0
  %v87 = vadd.f32 0.0, %v86
  %v88 = vpop.f32.mrb[0].mxu0
  %89 = vmatprep.mubr.bf16.mxu0 0
  %90 = vmatmul.mubr.bf16.gmra.mrb[0].mxu0 %v41
  %v91 = vpop.f32.mrb[0].mxu0
  %v92 = vadd.f32 0.0, %v91
  %v93 = vpop.f32.mrb[0].mxu0
  %v94 = vpop.f32.mrb[0].mxu0
  %v95 = vadd.f32 0.0, %v94
  %v96 = vpop.f32.mrb[0].mxu0
  %97 = vmatprep.mubr.bf16.mxu0 0
  %98 = vmatmul.mubr.bf16.gmra.mrb[0].mxu0 %v44
  %v99 = vpop.f32.mrb[0].mxu0
  %v100 = vadd.f32 0.0, %v99
  %v101 = vpop.f32.mrb[0].mxu0
  %v102 = vpop.f32.mrb[0].mxu0
  %v103 = vadd.f32 0.0, %v102
  %v104 = vpop.f32.mrb[0].mxu0
  %105 = vmatprep.mubr.bf16.mxu0 0
  %106 = vmatmul.mubr.bf16.gmra.mrb[0].mxu0 %v47
  %v107 = vpop.f32.mrb[0].mxu0
  %v108 = vadd.f32 0.0, %v107
  %v109 = vpop.f32.mrb[0].mxu0
  %v110 = vpop.f32.mrb[0].mxu0
  %v111 = vadd.f32 0.0, %v110
  %v112 = vpop.f32.mrb[0].mxu0
  %113 = vdwg.mxu0
  %114 = vst [vmem:[%s2] sm:$0xff] %v84
  %115 = vst [vmem:[%s2 + $0x8] sm:$0xff] %v87
  %116 = vst [vmem:[%s2 + $0x10] sm:$0xff] %v92
  %117 = vst [vmem:[%s2 + $0x18] sm:$0xff] %v95
  %118 = vst [vmem:[%s2 + $0x20] sm:$0xff] %v100
  %119 = vst [vmem:[%s2 + $0x28] sm:$0xff] %v103
  %120 = vst [vmem:[%s2 + $0x30] sm:$0xff] %v108
  %121 = vst [vmem:[%s2 + $0x38] sm:$0xff] %v111
  // Predicated region
  $region10: #{graph_conv_encoder_forward.7} parent=0 // pred_check
    _
  $region11: #{graph_conv_encoder_forward.7} parent=0 // pred_check_branch
    %123 = sbr.rel (0) target = $region13
  $region12: #{graph_conv_encoder_forward.7} parent=0 // pred_region
    _
  $region13: #{graph_conv_encoder_forward.7} parent=0 // pred_fallthru
    _
  // Predicated region
  $region14: #{graph_conv_encoder_forward.7} parent=0 // pred_check
    _
  $region15: #{graph_conv_encoder_forward.7} parent=0 // pred_check_branch
    %125 = sbr.rel (0) target = $region17
  $region16: #{graph_conv_encoder_forward.7} parent=0 // pred_region
    _
  $region17: #{graph_conv_encoder_forward.7} parent=0 // pred_fallthru
    _

// kernel: graph_conv_encoder_forward.8
$region0: #{graph_conv_encoder_forward.8}
  #allocation0 [shape = 'u32[]', space=smem, size = 0x4, offset = 0x4, fixed_abs, tag = 'smem constant byte address 0x4 - core index']
  #allocation1 [shape = 'u32[144,128]{1,0:T(1,128)}', space=vmem, size = 0x12000, scoped, tag = 'internal scratch']
  %s0 = inlined_call_operand.vmem [shape: f32[64,64], index: 0, kind: input, shape index: {}]
  %s1 = inlined_call_operand.vmem [shape: f32[64,128], index: 1, kind: input, shape index: {}]
  %s2 = inlined_call_operand.vmem [shape: f32[64,1], index: 2, kind: input, shape index: {}]
  %s3 = inlined_call_operand.vmem [shape: f32[128,128], index: 3, kind: input, shape index: {}]
  %s4 = inlined_call_operand.vmem [shape: f32[1,128], index: 4, kind: input, shape index: {}]
  %s5 = inlined_call_operand.vmem [shape: f32[1,128], index: 5, kind: input, shape index: {}]
  %s6 = inlined_call_operand.vmem [shape: f32[64,128], index: 6, kind: output, shape index: {}]
  %s7 = sld [smem:[#allocation0]]
  $region34: #{graph_conv_encoder_forward.8} parent=0
    _
  %s9 = ssub.s32 1, %s7
  %s10 = scalar_select 0, %s9, %s7
  // Predicated region
  $region2: #{graph_conv_encoder_forward.8} parent=0 // pred_check
    _
  $region3: #{graph_conv_encoder_forward.8} parent=0 // pred_check_branch
    %12 = sbr.rel (0) target = $region5
  $region4: #{graph_conv_encoder_forward.8} parent=0 // pred_region
    _
  $region5: #{graph_conv_encoder_forward.8} parent=0 // pred_fallthru
    _
  // Predicated region
  $region6: #{graph_conv_encoder_forward.8} parent=0 // pred_check
    _
  $region7: #{graph_conv_encoder_forward.8} parent=0 // pred_check_branch
    %14 = sbr.rel (0) target = $region9
  $region8: #{graph_conv_encoder_forward.8} parent=0 // pred_region
    _
  $region9: #{graph_conv_encoder_forward.8} parent=0 // pred_fallthru
    _
  // Predicated region
  $region10: #{graph_conv_encoder_forward.8} parent=0 // pred_check
    _
  $region11: #{graph_conv_encoder_forward.8} parent=0 // pred_check_branch
    %16 = sbr.rel (0) target = $region13
  $region12: #{graph_conv_encoder_forward.8} parent=0 // pred_region
    _
  $region13: #{graph_conv_encoder_forward.8} parent=0 // pred_fallthru
    _
  // Predicated region
  $region14: #{graph_conv_encoder_forward.8} parent=0 // pred_check
    _
  $region15: #{graph_conv_encoder_forward.8} parent=0 // pred_check_branch
    %18 = sbr.rel (0) target = $region17
  $region16: #{graph_conv_encoder_forward.8} parent=0 // pred_region
    _
  $region17: #{graph_conv_encoder_forward.8} parent=0 // pred_fallthru
    _
  // Predicated region
  $region18: #{graph_conv_encoder_forward.8} parent=0 // pred_check
    _
  $region19: #{graph_conv_encoder_forward.8} parent=0 // pred_check_branch
    %20 = sbr.rel (0) target = $region21
  $region20: #{graph_conv_encoder_forward.8} parent=0 // pred_region
    _
  $region21: #{graph_conv_encoder_forward.8} parent=0 // pred_fallthru
    _
  // Predicated region
  $region22: #{graph_conv_encoder_forward.8} parent=0 // pred_check
    _
  $region23: #{graph_conv_encoder_forward.8} parent=0 // pred_check_branch
    %22 = sbr.rel (0) target = $region25
  $region24: #{graph_conv_encoder_forward.8} parent=0 // pred_region
    _
  $region25: #{graph_conv_encoder_forward.8} parent=0 // pred_fallthru
    _
  %v24 = vld [vmem:[%s0] sm:$0xff]
  %v25 = vld [vmem:[%s0 + $0x8] sm:$0xff]
  %v26 = vld [vmem:[%s0 + $0x10] sm:$0xff]
  %v27 = vld [vmem:[%s0 + $0x18] sm:$0xff]
  %v28 = vld [vmem:[%s0 + $0x20] sm:$0xff]
  %v29 = vld [vmem:[%s0 + $0x28] sm:$0xff]
  %v30 = vld [vmem:[%s0 + $0x30] sm:$0xff]
  %v31 = vld [vmem:[%s0 + $0x38] sm:$0xff]
  %v32 = vld [vmem:[%s2] sm:$0xff]
  %v33 = vld [vmem:[%s2 + $0x8] sm:$0xff]
  %v34 = vld [vmem:[%s2 + $0x10] sm:$0xff]
  %v35 = vld [vmem:[%s2 + $0x18] sm:$0xff]
  %v36 = vld [vmem:[%s2 + $0x20] sm:$0xff]
  %v37 = vld [vmem:[%s2 + $0x28] sm:$0xff]
  %v38 = vld [vmem:[%s2 + $0x30] sm:$0xff]
  %v39 = vld [vmem:[%s2 + $0x38] sm:$0xff]
  %vm40 = vcmask 523264
  %v42 = vsel %vm40, %v24, 0
  %v45 = vsel %vm40, %v25, 0
  %v48 = vsel %vm40, %v26, 0
  %v51 = vsel %vm40, %v27, 0
  %v54 = vsel %vm40, %v28, 0
  %v57 = vsel %vm40, %v29, 0
  %v60 = vsel %vm40, %v30, 0
  %v63 = vsel %vm40, %v31, 0
  %65 = vmatprep.subr.mxu0 0.0
  %66 = vmatpush1.msra.mxu0 %v32
  %67 = vmatprep.subr.mxu0 0.0
  %68 = vmatpush1.msra.mxu0 %v33
  %69 = vmatprep.subr.mxu0 0.0
  %70 = vmatpush1.msra.mxu0 %v34
  %71 = vmatprep.subr.mxu0 0.0
  %72 = vmatpush1.msra.mxu0 %v35
  %73 = vmatprep.subr.mxu0 0.0
  %74 = vmatpush1.msra.mxu0 %v36
  %75 = vmatprep.subr.mxu0 0.0
  %76 = vmatpush1.msra.mxu0 %v37
  %77 = vmatprep.subr.mxu0 0.0
  %78 = vmatpush1.msra.mxu0 %v38
  %79 = vmatprep.subr.mxu0 0.0
  %80 = vmatpush1.msra.mxu0 %v39
  %81 = vmatprep.subr.mxu0 0.0
  %82 = vmatpush1.msra.mxu0 0.0
  %83 = vmatprep.subr.mxu0 0.0
  %84 = vmatpush1.msra.mxu0 0.0
  %85 = vmatprep.subr.mxu0 0.0
  %86 = vmatpush1.msra.mxu0 0.0
  %87 = vmatprep.subr.mxu0 0.0
  %88 = vmatpush1.msra.mxu0 0.0
  %89 = vmatprep.subr.mxu0 0.0
  %90 = vmatpush1.msra.mxu0 0.0
  %91 = vmatprep.subr.mxu0 0.0
  %92 = vmatpush1.msra.mxu0 0.0
  %93 = vmatprep.subr.mxu0 0.0
  %94 = vmatpush1.msra.mxu0 0.0
  %95 = vmatprep.subr.mxu0 0.0
  %96 = vmatpush1.msra.mxu0 0.0
  %97 = vmatprep.subr.mxu0 0.0
  %98 = vmatpush1.msra.mxu0 0.0
  %99 = vmatprep.subr.mxu0 0.0
  %100 = vmatpush1.msra.mxu0 0.0
  %101 = vmatprep.subr.mxu0 0.0
  %102 = vmatpush1.msra.mxu0 0.0
  %103 = vmatprep.subr.mxu0 0.0
  %104 = vmatpush1.msra.mxu0 0.0
  %105 = vmatprep.subr.mxu0 0.0
  %106 = vmatpush1.msra.mxu0 0.0
  %107 = vmatprep.subr.mxu0 0.0
  %108 = vmatpush1.msra.mxu0 0.0
  %109 = vmatprep.subr.mxu0 0.0
  %110 = vmatpush1.msra.mxu0 0.0
  %111 = vmatprep.subr.mxu0 0.0
  %112 = vmatpush1.msra.mxu0 0.0
  %113 = vmatprep.subr.mxu0 0.0
  %114 = vmatpush1.msra.mxu0 0.0
  %115 = vmatprep.subr.mxu0 0.0
  %116 = vmatpush1.msra.mxu0 0.0
  %117 = vmatprep.subr.mxu0 0.0
  %118 = vmatpush1.msra.mxu0 0.0
  %119 = vmatprep.subr.mxu0 0.0
  %120 = vmatpush1.msra.mxu0 0.0
  %121 = vmatprep.subr.mxu0 0.0
  %122 = vmatpush1.msra.mxu0 0.0
  %123 = vmatprep.subr.mxu0 0.0
  %124 = vmatpush1.msra.mxu0 0.0
  %125 = vmatprep.subr.mxu0 0.0
  %126 = vmatpush1.msra.mxu0 0.0
  %127 = vmatprep.subr.mxu0 0.0
  %128 = vmatpush1.msra.mxu0 0.0
  %129 = vmatprep.mubr.f32.mxu0 0.0
  %130 = vmatmul.mubr.f32.gmra.mrb[0].mxu0 %v42
  %v131 = vpop.f32.mrb[0].mxu0
  %v132 = vadd.f32 0.0, %v131
  %v133 = vpop.f32.mrb[0].mxu0
  %134 = vmatprep.mubr.f32.mxu0 0.0
  %135 = vmatmul.mubr.f32.gmra.mrb[0].mxu0 %v45
  %v136 = vpop.f32.mrb[0].mxu0
  %v137 = vadd.f32 0.0, %v136
  %v138 = vpop.f32.mrb[0].mxu0
  %139 = vmatprep.mubr.f32.mxu0 0.0
  %140 = vmatmul.mubr.f32.gmra.mrb[0].mxu0 %v48
  %v141 = vpop.f32.mrb[0].mxu0
  %v142 = vadd.f32 0.0, %v141
  %v143 = vpop.f32.mrb[0].mxu0
  %144 = vmatprep.mubr.f32.mxu0 0.0
  %145 = vmatmul.mubr.f32.gmra.mrb[0].mxu0 %v51
  %v146 = vpop.f32.mrb[0].mxu0
  %v147 = vadd.f32 0.0, %v146
  %v148 = vpop.f32.mrb[0].mxu0
  %149 = vmatprep.mubr.f32.mxu0 0.0
  %150 = vmatmul.mubr.f32.gmra.mrb[0].mxu0 %v54
  %v151 = vpop.f32.mrb[0].mxu0
  %v152 = vadd.f32 0.0, %v151
  %v153 = vpop.f32.mrb[0].mxu0
  %154 = vmatprep.mubr.f32.mxu0 0.0
  %155 = vmatmul.mubr.f32.gmra.mrb[0].mxu0 %v57
  %v156 = vpop.f32.mrb[0].mxu0
  %v157 = vadd.f32 0.0, %v156
  %v158 = vpop.f32.mrb[0].mxu0
  %159 = vmatprep.mubr.f32.mxu0 0.0
  %160 = vmatmul.mubr.f32.gmra.mrb[0].mxu0 %v60
  %v161 = vpop.f32.mrb[0].mxu0
  %v162 = vadd.f32 0.0, %v161
  %v163 = vpop.f32.mrb[0].mxu0
  %164 = vmatprep.mubr.f32.mxu0 0.0
  %165 = vmatmul.mubr.f32.gmra.mrb[0].mxu0 %v63
  %v166 = vpop.f32.mrb[0].mxu0
  %v167 = vadd.f32 0.0, %v166
  %v168 = vpop.f32.mrb[0].mxu0
  %169 = vdwg.mxu0
  %v170 = vmul.f32 %v32, %v132
  %v171 = vmul.f32 %v33, %v137
  %v172 = vmul.f32 %v34, %v142
  %v173 = vmul.f32 %v35, %v147
  %v174 = vmul.f32 %v36, %v152
  %v175 = vmul.f32 %v37, %v157
  %v176 = vmul.f32 %v38, %v162
  %v177 = vmul.f32 %v39, %v167
  %vm178 = vcmp.gt.f32.partialorder %v170, 0.0
  %vm179 = vcmp.gt.f32.partialorder %v171, 0.0
  %vm180 = vcmp.gt.f32.partialorder %v172, 0.0
  %vm181 = vcmp.gt.f32.partialorder %v173, 0.0
  %vm182 = vcmp.gt.f32.partialorder %v174, 0.0
  %vm183 = vcmp.gt.f32.partialorder %v175, 0.0
  %vm184 = vcmp.gt.f32.partialorder %v176, 0.0
  %vm185 = vcmp.gt.f32.partialorder %v177, 0.0
  %v186 = vmax.f32 %v170, 1e-12
  %v187 = vmax.f32 %v171, 1e-12
  %v188 = vmax.f32 %v172, 1e-12
  %v189 = vmax.f32 %v173, 1e-12
  %v190 = vmax.f32 %v174, 1e-12
  %v191 = vmax.f32 %v175, 1e-12
  %v192 = vmax.f32 %v176, 1e-12
  %v193 = vmax.f32 %v177, 1e-12
  %v194 = vrsqrt.pop %v186
  %v195 = vrsqrt.pop %v187
  %v196 = vrsqrt.pop %v188
  %v197 = vrsqrt.pop %v189
  %v198 = vrsqrt.pop %v190
  %v199 = vrsqrt.pop %v191
  %v200 = vrsqrt.pop %v192
  %v201 = vrsqrt.pop %v193
  %v202 = vsel %vm178, %v194, 0.0
  %v203 = vsel %vm179, %v195, 0.0
  %v204 = vsel %vm180, %v196, 0.0
  %v205 = vsel %vm181, %v197, 0.0
  %v206 = vsel %vm182, %v198, 0.0
  %v207 = vsel %vm183, %v199, 0.0
  %v208 = vsel %vm184, %v200, 0.0
  %v209 = vsel %vm185, %v201, 0.0
  %v210 = vld [vmem:[%s1] sm:$0xff]
  %v211 = vld [vmem:[%s1 + $0x8] sm:$0xff]
  %v212 = vld [vmem:[%s1 + $0x10] sm:$0xff]
  %v213 = vld [vmem:[%s1 + $0x18] sm:$0xff]
  %v214 = vld [vmem:[%s1 + $0x20] sm:$0xff]
  %v215 = vld [vmem:[%s1 + $0x28] sm:$0xff]
  %v216 = vld [vmem:[%s1 + $0x30] sm:$0xff]
  %v217 = vld [vmem:[%s1 + $0x38] sm:$0xff]
  %v218 = vpack.c.bf16 %v211, %v210
  %v219 = vpack.c.bf16 %v213, %v212
  %v220 = vpack.c.bf16 %v215, %v214
  %v221 = vpack.c.bf16 %v217, %v216
  %v222 = vld [vmem:[%s3] sm:$0xff]
  %v223 = vld [vmem:[%s3 + $0x8] sm:$0xff]
  %v224 = vld [vmem:[%s3 + $0x10] sm:$0xff]
  %v225 = vld [vmem:[%s3 + $0x18] sm:$0xff]
  %v226 = vld [vmem:[%s3 + $0x20] sm:$0xff]
  %v227 = vld [vmem:[%s3 + $0x28] sm:$0xff]
  %v228 = vld [vmem:[%s3 + $0x30] sm:$0xff]
  %v229 = vld [vmem:[%s3 + $0x38] sm:$0xff]
  %v230 = vld [vmem:[%s3 + $0x40] sm:$0xff]
  %v231 = vld [vmem:[%s3 + $0x48] sm:$0xff]
  %v232 = vld [vmem:[%s3 + $0x50] sm:$0xff]
  %v233 = vld [vmem:[%s3 + $0x58] sm:$0xff]
  %v234 = vld [vmem:[%s3 + $0x60] sm:$0xff]
  %v235 = vld [vmem:[%s3 + $0x68] sm:$0xff]
  %v236 = vld [vmem:[%s3 + $0x70] sm:$0xff]
  %v237 = vld [vmem:[%s3 + $0x78] sm:$0xff]
  %v238 = vpack.c.bf16 %v223, %v222
  %v239 = vpack.c.bf16 %v225, %v224
  %v240 = vpack.c.bf16 %v227, %v226
  %v241 = vpack.c.bf16 %v229, %v228
  %v242 = vpack.c.bf16 %v231, %v230
  %v243 = vpack.c.bf16 %v233, %v232
  %v244 = vpack.c.bf16 %v235, %v234
  %v245 = vpack.c.bf16 %v237, %v236
  %246 = vmatprep.subr.bf16.mxu0 0
  %247 = vmatpush1.bf16.msra.mxu0 %v238
  %248 = vmatprep.subr.bf16.mxu0 0
  %249 = vmatpush1.bf16.msra.mxu0 %v239
  %250 = vmatprep.subr.bf16.mxu0 0
  %251 = vmatpush1.bf16.msra.mxu0 %v240
  %252 = vmatprep.subr.bf16.mxu0 0
  %253 = vmatpush1.bf16.msra.mxu0 %v241
  %254 = vmatprep.subr.bf16.mxu0 0
  %255 = vmatpush1.bf16.msra.mxu0 %v242
  %256 = vmatprep.subr.bf16.mxu0 0
  %257 = vmatpush1.bf16.msra.mxu0 %v243
  %258 = vmatprep.subr.bf16.mxu0 0
  %259 = vmatpush1.bf16.msra.mxu0 %v244
  %260 = vmatprep.subr.bf16.mxu0 0
  %261 = vmatpush1.bf16.msra.mxu0 %v245
  %262 = vmatprep.subr.bf16.mxu0 0
  %263 = vmatpush1.bf16.msra.mxu0 0
  %264 = vmatprep.subr.bf16.mxu0 0
  %265 = vmatpush1.bf16.msra.mxu0 0
  %266 = vmatprep.subr.bf16.mxu0 0
  %267 = vmatpush1.bf16.msra.mxu0 0
  %268 = vmatprep.subr.bf16.mxu0 0
  %269 = vmatpush1.bf16.msra.mxu0 0
  %270 = vmatprep.subr.bf16.mxu0 0
  %271 = vmatpush1.bf16.msra.mxu0 0
  %272 = vmatprep.subr.bf16.mxu0 0
  %273 = vmatpush1.bf16.msra.mxu0 0
  %274 = vmatprep.subr.bf16.mxu0 0
  %275 = vmatpush1.bf16.msra.mxu0 0
  %276 = vmatprep.subr.bf16.mxu0 0
  %277 = vmatpush1.bf16.msra.mxu0 0
  %278 = vmatprep.mubr.bf16.mxu0 0
  %279 = vmatmul.mubr.bf16.gmra.mrb[0].mxu0 %v218
  %v280 = vpop.f32.mrb[0].mxu0
  %v281 = vadd.f32 0.0, %v280
  %v282 = vpop.f32.mrb[0].mxu0
  %v283 = vpop.f32.mrb[0].mxu0
  %v284 = vadd.f32 0.0, %v283
  %v285 = vpop.f32.mrb[0].mxu0
  %286 = vmatprep.mubr.bf16.mxu0 0
  %287 = vmatmul.mubr.bf16.gmra.mrb[0].mxu0 %v219
  %v288 = vpop.f32.mrb[0].mxu0
  %v289 = vadd.f32 0.0, %v288
  %v290 = vpop.f32.mrb[0].mxu0
  %v291 = vpop.f32.mrb[0].mxu0
  %v292 = vadd.f32 0.0, %v291
  %v293 = vpop.f32.mrb[0].mxu0
  %294 = vmatprep.mubr.bf16.mxu0 0
  %295 = vmatmul.mubr.bf16.gmra.mrb[0].mxu0 %v220
  %v296 = vpop.f32.mrb[0].mxu0
  %v297 = vadd.f32 0.0, %v296
  %v298 = vpop.f32.mrb[0].mxu0
  %v299 = vpop.f32.mrb[0].mxu0
  %v300 = vadd.f32 0.0, %v299
  %v301 = vpop.f32.mrb[0].mxu0
  %302 = vmatprep.mubr.bf16.mxu0 0
  %303 = vmatmul.mubr.bf16.gmra.mrb[0].mxu0 %v221
  %v304 = vpop.f32.mrb[0].mxu0
  %v305 = vadd.f32 0.0, %v304
  %v306 = vpop.f32.mrb[0].mxu0
  %v307 = vpop.f32.mrb[0].mxu0
  %v308 = vadd.f32 0.0, %v307
  %v309 = vpop.f32.mrb[0].mxu0
  %310 = vdwg.mxu0
  %v311 = vpack.c.bf16 %v25, %v24
  %v312 = vpack.c.bf16 %v27, %v26
  %v313 = vpack.c.bf16 %v29, %v28
  %v314 = vpack.c.bf16 %v31, %v30
  %316 = vset.pattern.permute.xlu0 0
  %317 = vperm.xlu0 %316, %v202
  %v318 = vpop.permute.xlu0 %317
  %321 = vset.pattern.permute.xlu0 0
  %322 = vperm.xlu0 %321, %v203
  %v323 = vpop.permute.xlu0 %322
  %326 = vset.pattern.permute.xlu0 0
  %327 = vperm.xlu0 %326, %v204
  %v328 = vpop.permute.xlu0 %327
  %331 = vset.pattern.permute.xlu0 0
  %332 = vperm.xlu0 %331, %v205
  %v333 = vpop.permute.xlu0 %332
  %336 = vset.pattern.permute.xlu0 0
  %337 = vperm.xlu0 %336, %v206
  %v338 = vpop.permute.xlu0 %337
  %341 = vset.pattern.permute.xlu0 0
  %342 = vperm.xlu0 %341, %v207
  %v343 = vpop.permute.xlu0 %342
  %346 = vset.pattern.permute.xlu0 0
  %347 = vperm.xlu0 %346, %v208
  %v348 = vpop.permute.xlu0 %347
  %351 = vset.pattern.permute.xlu0 0
  %352 = vperm.xlu0 %351, %v209
  %v353 = vpop.permute.xlu0 %352
  %v355 = vmul.f32 %v318, %v281
  %v356 = vmul.f32 %v323, %v284
  %v357 = vmul.f32 %v328, %v289
  %v358 = vmul.f32 %v333, %v292
  %v359 = vmul.f32 %v338, %v297
  %v360 = vmul.f32 %v343, %v300
  %v361 = vmul.f32 %v348, %v305
  %v362 = vmul.f32 %v353, %v308
  %v363 = vpack.c.bf16 %v356, %v355
  %v364 = vpack.c.bf16 %v358, %v357
  %v365 = vpack.c.bf16 %v360, %v359
  %v366 = vpack.c.bf16 %v362, %v361
  %v368 = vsel %vm40, %v311, 0
  %v371 = vsel %vm40, %v312, 0
  %v374 = vsel %vm40, %v313, 0
  %v377 = vsel %vm40, %v314, 0
  %379 = vmatprep.subr.bf16.mxu0 0
  %380 = vmatpush1.bf16.msra.mxu0 %v363
  %381 = vmatprep.subr.bf16.mxu0 0
  %382 = vmatpush1.bf16.msra.mxu0 %v364
  %383 = vmatprep.subr.bf16.mxu0 0
  %384 = vmatpush1.bf16.msra.mxu0 %v365
  %385 = vmatprep.subr.bf16.mxu0 0
  %386 = vmatpush1.bf16.msra.mxu0 %v366
  %387 = vmatprep.subr.bf16.mxu0 0
  %388 = vmatpush1.bf16.msra.mxu0 0
  %389 = vmatprep.subr.bf16.mxu0 0
  %390 = vmatpush1.bf16.msra.mxu0 0
  %391 = vmatprep.subr.bf16.mxu0 0
  %392 = vmatpush1.bf16.msra.mxu0 0
  %393 = vmatprep.subr.bf16.mxu0 0
  %394 = vmatpush1.bf16.msra.mxu0 0
  %395 = vmatprep.subr.bf16.mxu0 0
  %396 = vmatpush1.bf16.msra.mxu0 0
  %397 = vmatprep.subr.bf16.mxu0 0
  %398 = vmatpush1.bf16.msra.mxu0 0
  %399 = vmatprep.subr.bf16.mxu0 0
  %400 = vmatpush1.bf16.msra.mxu0 0
  %401 = vmatprep.subr.bf16.mxu0 0
  %402 = vmatpush1.bf16.msra.mxu0 0
  %403 = vmatprep.subr.bf16.mxu0 0
  %404 = vmatpush1.bf16.msra.mxu0 0
  %405 = vmatprep.subr.bf16.mxu0 0
  %406 = vmatpush1.bf16.msra.mxu0 0
  %407 = vmatprep.subr.bf16.mxu0 0
  %408 = vmatpush1.bf16.msra.mxu0 0
  %409 = vmatprep.subr.bf16.mxu0 0
  %410 = vmatpush1.bf16.msra.mxu0 0
  %411 = vmatprep.mubr.bf16.mxu0 0
  %412 = vmatmul.mubr.bf16.gmra.mrb[0].mxu0 %v368
  %v413 = vpop.f32.mrb[0].mxu0
  %v414 = vadd.f32 0.0, %v413
  %v415 = vpop.f32.mrb[0].mxu0
  %v416 = vpop.f32.mrb[0].mxu0
  %v417 = vadd.f32 0.0, %v416
  %v418 = vpop.f32.mrb[0].mxu0
  %419 = vmatprep.mubr.bf16.mxu0 0
  %420 = vmatmul.mubr.bf16.gmra.mrb[0].mxu0 %v371
  %v421 = vpop.f32.mrb[0].mxu0
  %v422 = vadd.f32 0.0, %v421
  %v423 = vpop.f32.mrb[0].mxu0
  %v424 = vpop.f32.mrb[0].mxu0
  %v425 = vadd.f32 0.0, %v424
  %v426 = vpop.f32.mrb[0].mxu0
  %427 = vmatprep.mubr.bf16.mxu0 0
  %428 = vmatmul.mubr.bf16.gmra.mrb[0].mxu0 %v374
  %v429 = vpop.f32.mrb[0].mxu0
  %v430 = vadd.f32 0.0, %v429
  %v431 = vpop.f32.mrb[0].mxu0
  %v432 = vpop.f32.mrb[0].mxu0
  %v433 = vadd.f32 0.0, %v432
  %v434 = vpop.f32.mrb[0].mxu0
  %435 = vmatprep.mubr.bf16.mxu0 0
  %436 = vmatmul.mubr.bf16.gmra.mrb[0].mxu0 %v377
  %v437 = vpop.f32.mrb[0].mxu0
  %v438 = vadd.f32 0.0, %v437
  %v439 = vpop.f32.mrb[0].mxu0
  %v440 = vpop.f32.mrb[0].mxu0
  %v441 = vadd.f32 0.0, %v440
  %v442 = vpop.f32.mrb[0].mxu0
  %443 = vdwg.mxu0
  %v444 = vmul.f32 %v318, %v414
  %v445 = vmul.f32 %v323, %v417
  %v446 = vmul.f32 %v328, %v422
  %v447 = vmul.f32 %v333, %v425
  %v448 = vmul.f32 %v338, %v430
  %v449 = vmul.f32 %v343, %v433
  %v450 = vmul.f32 %v348, %v438
  %v451 = vmul.f32 %v353, %v441
  %v452 = vld [vmem:[%s4] sm:$0x1]
  %v454 = vlaneseq
  %v455 = vshrl.u32 %v454, 7
  %v456 = vsub.s32 0, %v455
  %v457 = vrot.slane %v452, %v456
  %v459 = vadd.f32 %v444, %v457
  %v460 = vadd.f32 %v445, %v457
  %v461 = vadd.f32 %v446, %v457
  %v462 = vadd.f32 %v447, %v457
  %v463 = vadd.f32 %v448, %v457
  %v464 = vadd.f32 %v449, %v457
  %v465 = vadd.f32 %v450, %v457
  %v466 = vadd.f32 %v451, %v457
  %v467 = vmax.f32 %v459, 0.0
  %v468 = vmax.f32 %v460, 0.0
  %v469 = vmax.f32 %v461, 0.0
  %v470 = vmax.f32 %v462, 0.0
  %v471 = vmax.f32 %v463, 0.0
  %v472 = vmax.f32 %v464, 0.0
  %v473 = vmax.f32 %v465, 0.0
  %v474 = vmax.f32 %v466, 0.0
  %v475 = vld [vmem:[%s5] sm:$0x1]
  %v477 = vlaneseq
  %v478 = vshrl.u32 %v477, 7
  %v479 = vsub.s32 0, %v478
  %v480 = vrot.slane %v475, %v479
  %v482 = vmul.f32 %v467, %v480
  %v483 = vmul.f32 %v468, %v480
  %v484 = vmul.f32 %v469, %v480
  %v485 = vmul.f32 %v470, %v480
  %v486 = vmul.f32 %v471, %v480
  %v487 = vmul.f32 %v472, %v480
  %v488 = vmul.f32 %v473, %v480
  %v489 = vmul.f32 %v474, %v480
  %490 = vadd.xlane.f32.xlu0 %v482
  %v491 = vpop.xlane.xlu0 %490
  %492 = vadd.xlane.f32.xlu0 %v483
  %v493 = vpop.xlane.xlu0 %492
  %494 = vadd.xlane.f32.xlu0 %v484
  %v495 = vpop.xlane.xlu0 %494
  %496 = vadd.xlane.f32.xlu0 %v485
  %v497 = vpop.xlane.xlu0 %496
  %498 = vadd.xlane.f32.xlu0 %v486
  %v499 = vpop.xlane.xlu0 %498
  %500 = vadd.xlane.f32.xlu0 %v487
  %v501 = vpop.xlane.xlu0 %500
  %502 = vadd.xlane.f32.xlu0 %v488
  %v503 = vpop.xlane.xlu0 %502
  %504 = vadd.xlane.f32.xlu0 %v489
  %v505 = vpop.xlane.xlu0 %504
  %v506 = vlaneseq
  %v507 = vand.u32 %v506, 127
  %vm508 = vcmp.eq.s32.totalorder %v507, 32
  %v509 = vsel %vm508, %v491, %v467
  %v510 = vsel %vm508, %v493, %v468
  %v511 = vsel %vm508, %v495, %v469
  %v512 = vsel %vm508, %v497, %v470
  %v513 = vsel %vm508, %v499, %v471
  %v514 = vsel %vm508, %v501, %v472
  %v515 = vsel %vm508, %v503, %v473
  %v516 = vsel %vm508, %v505, %v474
  %517 = vst [vmem:[%s6] sm:$0xff] %v509
  %518 = vst [vmem:[%s6 + $0x8] sm:$0xff] %v510
  %519 = vst [vmem:[%s6 + $0x10] sm:$0xff] %v511
  %520 = vst [vmem:[%s6 + $0x18] sm:$0xff] %v512
  %521 = vst [vmem:[%s6 + $0x20] sm:$0xff] %v513
  %522 = vst [vmem:[%s6 + $0x28] sm:$0xff] %v514
  %523 = vst [vmem:[%s6 + $0x30] sm:$0xff] %v515
  %524 = vst [vmem:[%s6 + $0x38] sm:$0xff] %v516
  // Predicated region
  $region26: #{graph_conv_encoder_forward.8} parent=0 // pred_check
    _
  $region27: #{graph_conv_encoder_forward.8} parent=0 // pred_check_branch
    %526 = sbr.rel (0) target = $region29
  $region28: #{graph_conv_encoder_forward.8} parent=0 // pred_region
    _
  $region29: #{graph_conv_encoder_forward.8} parent=0 // pred_fallthru
    _
  // Predicated region
  $region30: #{graph_conv_encoder_forward.8} parent=0 // pred_check
    _
  $region31: #{graph_conv_encoder_forward.8} parent=0 // pred_check_branch
    %528 = sbr.rel (0) target = $region33
  $region32: #{graph_conv_encoder_forward.8} parent=0 // pred_region
    _
  $region33: #{graph_conv_encoder_forward.8} parent=0 // pred_fallthru
    _

// kernel: graph_conv_encoder_forward.9
$region0: #{graph_conv_encoder_forward.9}
  #allocation0 [shape = 'u32[]', space=smem, size = 0x4, offset = 0x4, fixed_abs, tag = 'smem constant byte address 0x4 - core index']
  #allocation1 [shape = 'u32[144,128]{1,0:T(1,128)}', space=vmem, size = 0x12000, scoped, tag = 'internal scratch']
  #allocation2 [shape = 'f32[1,1]{1,0:T(1,128)S(1)}', space=vmem, size = 0x200, scoped, tag = 'scoped memory for graph_conv_encoder_forward.9']
  %s0 = inlined_call_operand.vmem [shape: f32[64,128], index: 0, kind: input, shape index: {}]
  %s1 = inlined_call_operand.vmem [shape: f32[64,1], index: 1, kind: input, shape index: {}]
  %s2 = inlined_call_operand.vmem [shape: f32[2,64], index: 2, kind: input, shape index: {}]
  %s3 = inlined_call_operand.vmem [shape: f32[1,128], index: 3, kind: input, shape index: {}]
  %s4 = inlined_call_operand.<no memory space> [shape: f32[1,1], index: 4, kind: input, shape index: {}]
  %s5 = inlined_call_operand.vmem [shape: f32[2,128], index: 5, kind: input, shape index: {}, may-alias: {5,6}]
  %s6 = inlined_call_operand.vmem [shape: f32[2,128], index: 6, kind: output, shape index: {0}, may-alias: {5,6}]
  %s7 = inlined_call_operand.vmem [shape: f32[64,128], index: 7, kind: output, shape index: {1}]
  %8 = xla_tuple %s6, %s7
  %s9 = sld [smem:[#allocation0]]
  $region42: #{graph_conv_encoder_forward.9} parent=0
    _
  %s11 = ssub.s32 1, %s9
  %s12 = scalar_select 0, %s11, %s9
  %v13 = vstv %s4
  %14 = vst [vmem:[#allocation2] sm:$0x1] %v13
  // Predicated region
  $region2: #{graph_conv_encoder_forward.9} parent=0 // pred_check
    _
  $region3: #{graph_conv_encoder_forward.9} parent=0 // pred_check_branch
    %16 = sbr.rel (0) target = $region5
  $region4: #{graph_conv_encoder_forward.9} parent=0 // pred_region
    _
  $region5: #{graph_conv_encoder_forward.9} parent=0 // pred_fallthru
    _
  // Predicated region
  $region6: #{graph_conv_encoder_forward.9} parent=0 // pred_check
    _
  $region7: #{graph_conv_encoder_forward.9} parent=0 // pred_check_branch
    %18 = sbr.rel (0) target = $region9
  $region8: #{graph_conv_encoder_forward.9} parent=0 // pred_region
    _
  $region9: #{graph_conv_encoder_forward.9} parent=0 // pred_fallthru
    _
  // Predicated region
  $region10: #{graph_conv_encoder_forward.9} parent=0 // pred_check
    _
  $region11: #{graph_conv_encoder_forward.9} parent=0 // pred_check_branch
    %20 = sbr.rel (0) target = $region13
  $region12: #{graph_conv_encoder_forward.9} parent=0 // pred_region
    _
  $region13: #{graph_conv_encoder_forward.9} parent=0 // pred_fallthru
    _
  // Predicated region
  $region14: #{graph_conv_encoder_forward.9} parent=0 // pred_check
    _
  $region15: #{graph_conv_encoder_forward.9} parent=0 // pred_check_branch
    %22 = sbr.rel (0) target = $region17
  $region16: #{graph_conv_encoder_forward.9} parent=0 // pred_region
    _
  $region17: #{graph_conv_encoder_forward.9} parent=0 // pred_fallthru
    _
  // Predicated region
  $region18: #{graph_conv_encoder_forward.9} parent=0 // pred_check
    _
  $region19: #{graph_conv_encoder_forward.9} parent=0 // pred_check_branch
    %24 = sbr.rel (0) target = $region21
  $region20: #{graph_conv_encoder_forward.9} parent=0 // pred_region
    _
  $region21: #{graph_conv_encoder_forward.9} parent=0 // pred_fallthru
    _
  // Predicated region
  $region22: #{graph_conv_encoder_forward.9} parent=0 // pred_check
    _
  $region23: #{graph_conv_encoder_forward.9} parent=0 // pred_check_branch
    %26 = sbr.rel (0) target = $region25
  $region24: #{graph_conv_encoder_forward.9} parent=0 // pred_region
    _
  $region25: #{graph_conv_encoder_forward.9} parent=0 // pred_fallthru
    _
  %v27 = vld [vmem:[%s0] sm:$0xff]
  %v28 = vld [vmem:[%s0 + $0x8] sm:$0xff]
  %v29 = vld [vmem:[%s0 + $0x10] sm:$0xff]
  %v30 = vld [vmem:[%s0 + $0x18] sm:$0xff]
  %v31 = vld [vmem:[%s0 + $0x20] sm:$0xff]
  %v32 = vld [vmem:[%s0 + $0x28] sm:$0xff]
  %v33 = vld [vmem:[%s0 + $0x30] sm:$0xff]
  %v34 = vld [vmem:[%s0 + $0x38] sm:$0xff]
  %v35 = vlaneseq
  %v36 = vand.u32 %v35, 127
  %vm37 = vcmp.eq.s32.totalorder %v36, 32
  %v38 = vsel %vm37, %v27, 0.0
  %v39 = vsel %vm37, %v28, 0.0
  %v40 = vsel %vm37, %v29, 0.0
  %v41 = vsel %vm37, %v30, 0.0
  %v42 = vsel %vm37, %v31, 0.0
  %v43 = vsel %vm37, %v32, 0.0
  %v44 = vsel %vm37, %v33, 0.0
  %v45 = vsel %vm37, %v34, 0.0
  %46 = vadd.xlane.f32.xlu0 %v38
  %v47 = vpop.xlane.xlu0 %46
  %48 = vadd.xlane.f32.xlu0 %v39
  %v49 = vpop.xlane.xlu0 %48
  %50 = vadd.xlane.f32.xlu0 %v40
  %v51 = vpop.xlane.xlu0 %50
  %52 = vadd.xlane.f32.xlu0 %v41
  %v53 = vpop.xlane.xlu0 %52
  %54 = vadd.xlane.f32.xlu0 %v42
  %v55 = vpop.xlane.xlu0 %54
  %56 = vadd.xlane.f32.xlu0 %v43
  %v57 = vpop.xlane.xlu0 %56
  %58 = vadd.xlane.f32.xlu0 %v44
  %v59 = vpop.xlane.xlu0 %58
  %60 = vadd.xlane.f32.xlu0 %v45
  %v61 = vpop.xlane.xlu0 %60
  %v62 = vtanh.pop %v47
  %v63 = vtanh.pop %v49
  %v64 = vtanh.pop %v51
  %v65 = vtanh.pop %v53
  %v66 = vtanh.pop %v55
  %v67 = vtanh.pop %v57
  %v68 = vtanh.pop %v59
  %v69 = vtanh.pop %v61
  %v70 = vmul.f32 %v27, %v62
  %v71 = vmul.f32 %v28, %v63
  %v72 = vmul.f32 %v29, %v64
  %v73 = vmul.f32 %v30, %v65
  %v74 = vmul.f32 %v31, %v66
  %v75 = vmul.f32 %v32, %v67
  %v76 = vmul.f32 %v33, %v68
  %v77 = vmul.f32 %v34, %v69
  %v78 = vld [vmem:[%s1] sm:$0xff]
  %v79 = vld [vmem:[%s1 + $0x8] sm:$0xff]
  %v80 = vld [vmem:[%s1 + $0x10] sm:$0xff]
  %v81 = vld [vmem:[%s1 + $0x18] sm:$0xff]
  %v82 = vld [vmem:[%s1 + $0x20] sm:$0xff]
  %v83 = vld [vmem:[%s1 + $0x28] sm:$0xff]
  %v84 = vld [vmem:[%s1 + $0x30] sm:$0xff]
  %v85 = vld [vmem:[%s1 + $0x38] sm:$0xff]
  %87 = vset.pattern.permute.xlu0 0
  %88 = vperm.xlu0 %87, %v78
  %v89 = vpop.permute.xlu0 %88
  %92 = vset.pattern.permute.xlu0 0
  %93 = vperm.xlu0 %92, %v79
  %v94 = vpop.permute.xlu0 %93
  %97 = vset.pattern.permute.xlu0 0
  %98 = vperm.xlu0 %97, %v80
  %v99 = vpop.permute.xlu0 %98
  %102 = vset.pattern.permute.xlu0 0
  %103 = vperm.xlu0 %102, %v81
  %v104 = vpop.permute.xlu0 %103
  %107 = vset.pattern.permute.xlu0 0
  %108 = vperm.xlu0 %107, %v82
  %v109 = vpop.permute.xlu0 %108
  %112 = vset.pattern.permute.xlu0 0
  %113 = vperm.xlu0 %112, %v83
  %v114 = vpop.permute.xlu0 %113
  %117 = vset.pattern.permute.xlu0 0
  %118 = vperm.xlu0 %117, %v84
  %v119 = vpop.permute.xlu0 %118
  %122 = vset.pattern.permute.xlu0 0
  %123 = vperm.xlu0 %122, %v85
  %v124 = vpop.permute.xlu0 %123
  %v126 = vmul.f32 %v70, %v89
  %v127 = vmul.f32 %v71, %v94
  %v128 = vmul.f32 %v72, %v99
  %v129 = vmul.f32 %v73, %v104
  %v130 = vmul.f32 %v74, %v109
  %v131 = vmul.f32 %v75, %v114
  %v132 = vmul.f32 %v76, %v119
  %v133 = vmul.f32 %v77, %v124
  %v134 = vld [vmem:[%s3] sm:$0x1]
  %v135 = vld [vmem:[#allocation2] sm:$0x1]
  %137 = vset.pattern.permute.xlu0 0
  %138 = vperm.xlu0 %137, %v135
  %v139 = vpop.permute.xlu0 %138
  %v141 = vlaneseq
  %v142 = vshrl.u32 %v141, 7
  %v143 = vsub.s32 0, %v142
  %v144 = vrot.slane %v139, %v143
  %145 = vmatprep.subr.mxu0 0.0
  %146 = vmatpush1.xpose.msra.mxu0 %v126
  %147 = vmatprep.subr.mxu0 0.0
  %148 = vmatpush1.xpose.msra.mxu0 %v127
  %149 = vmatprep.subr.mxu0 0.0
  %150 = vmatpush1.xpose.msra.mxu0 %v128
  %151 = vmatprep.subr.mxu0 0.0
  %152 = vmatpush1.xpose.msra.mxu0 %v129
  %153 = vmatprep.subr.mxu0 0.0
  %154 = vmatpush1.xpose.msra.mxu0 %v130
  %155 = vmatprep.subr.mxu0 0.0
  %156 = vmatpush1.xpose.msra.mxu0 %v131
  %157 = vmatprep.subr.mxu0 0.0
  %158 = vmatpush1.xpose.msra.mxu0 %v132
  %159 = vmatprep.subr.mxu0 0.0
  %160 = vmatpush1.xpose.msra.mxu0 %v133
  %161 = vmatprep.subr.mxu0 0.0
  %162 = vmatpush1.xpose.msra.mxu0 0.0
  %163 = vmatprep.subr.mxu0 0.0
  %164 = vmatpush1.xpose.msra.mxu0 0.0
  %165 = vmatprep.subr.mxu0 0.0
  %166 = vmatpush1.xpose.msra.mxu0 0.0
  %167 = vmatprep.subr.mxu0 0.0
  %168 = vmatpush1.xpose.msra.mxu0 0.0
  %169 = vmatprep.subr.mxu0 0.0
  %170 = vmatpush1.xpose.msra.mxu0 0.0
  %171 = vmatprep.subr.mxu0 0.0
  %172 = vmatpush1.xpose.msra.mxu0 0.0
  %173 = vmatprep.subr.mxu0 0.0
  %174 = vmatpush1.xpose.msra.mxu0 0.0
  %175 = vmatprep.subr.mxu0 0.0
  %176 = vmatpush1.xpose.msra.mxu0 0.0
  %177 = vmatprep.subr.mxu0 0.0
  %178 = vmatpush1.xpose.msra.mxu0 0.0
  %179 = vmatprep.subr.mxu0 0.0
  %180 = vmatpush1.xpose.msra.mxu0 0.0
  %181 = vmatprep.subr.mxu0 0.0
  %182 = vmatpush1.xpose.msra.mxu0 0.0
  %183 = vmatprep.subr.mxu0 0.0
  %184 = vmatpush1.xpose.msra.mxu0 0.0
  %185 = vmatprep.subr.mxu0 0.0
  %186 = vmatpush1.xpose.msra.mxu0 0.0
  %187 = vmatprep.subr.mxu0 0.0
  %188 = vmatpush1.xpose.msra.mxu0 0.0
  %189 = vmatprep.subr.mxu0 0.0
  %190 = vmatpush1.xpose.msra.mxu0 0.0
  %191 = vmatprep.subr.mxu0 0.0
  %192 = vmatpush1.xpose.msra.mxu0 0.0
  %193 = vmatprep.subr.mxu0 0.0
  %194 = vmatpush1.xpose.msra.mxu0 0.0
  %195 = vmatprep.subr.mxu0 0.0
  %196 = vmatpush1.xpose.msra.mxu0 0.0
  %197 = vmatprep.subr.mxu0 0.0
  %198 = vmatpush1.xpose.msra.mxu0 0.0
  %199 = vmatprep.subr.mxu0 0.0
  %200 = vmatpush1.xpose.msra.mxu0 0.0
  %201 = vmatprep.subr.mxu0 0.0
  %202 = vmatpush1.xpose.msra.mxu0 0.0
  %203 = vmatprep.subr.mxu0 0.0
  %204 = vmatpush1.xpose.msra.mxu0 0.0
  %205 = vmatprep.subr.mxu0 0.0
  %206 = vmatpush1.xpose.msra.mxu0 0.0
  %207 = vmatprep.subr.mxu0 0.0
  %208 = vmatpush1.xpose.msra.mxu0 0.0
  %209 = vmatprep.mubr.f32.mxu0 0.0
  %210 = vmatmul.mubr.f32.gmra.mrb[0].mxu0 %v134
  %v211 = vpop.f32.mrb[0].mxu0
  %v212 = vadd.f32 %v144, %v211
  %v213 = vpop.f32.mrb[0].mxu0
  %214 = vdwg.mxu0
  %v215 = vld [vmem:[%s2] sm:$0x3]
  %vm216 = vcmp.gt.f32.partialorder %v215, 0.0
  %v217 = vlaneseq
  %v218 = vshrl.u32 %v217, 7
  %v219 = vsub.s32 0, %v218
  %v220 = vrot.slane %v212, %v219
  %v221 = vsel %vm216, %v220, -1e+30
  %vm222 = vcmask 517120
  %v223 = vsel %vm222, %v221, -inf
  %224 = vmax.xlane.f32.xlu0 %v223
  %v225 = vpop.xlane.xlu0 %224
  %v226 = vsub.f32 %v221, %v225
  %v227 = vmul.f32 %v226, 1.442695
  %v228 = vpow.pop %v227
  %v229 = vmul.f32 %v228, %v215
  %v230 = vsel %vm222, %v229, 0.0
  %231 = vadd.xlane.f32.xlu0 %v230
  %v232 = vpop.xlane.xlu0 %231
  %vm233 = vcmp.gt.f32.partialorder %v232, 0.0
  %v234 = vmax.f32 %v232, 1e-30
  %v235 = vrcp.pop %v234
  %v236 = vsel %vm233, %v235, 0.0
  %v237 = vmul.f32 %v229, %v236
  %vm238 = vcmask 523264
  %v240 = vsel %vm238, %v237, 0
  %242 = vmatprep.subr.mxu0 0.0
  %243 = vmatpush1.msra.mxu0 %v126
  %244 = vmatprep.subr.mxu0 0.0
  %245 = vmatpush1.msra.mxu0 %v127
  %246 = vmatprep.subr.mxu0 0.0
  %247 = vmatpush1.msra.mxu0 %v128
  %248 = vmatprep.subr.mxu0 0.0
  %249 = vmatpush1.msra.mxu0 %v129
  %250 = vmatprep.subr.mxu0 0.0
  %251 = vmatpush1.msra.mxu0 %v130
  %252 = vmatprep.subr.mxu0 0.0
  %253 = vmatpush1.msra.mxu0 %v131
  %254 = vmatprep.subr.mxu0 0.0
  %255 = vmatpush1.msra.mxu0 %v132
  %256 = vmatprep.subr.mxu0 0.0
  %257 = vmatpush1.msra.mxu0 %v133
  %258 = vmatprep.subr.mxu0 0.0
  %259 = vmatpush1.msra.mxu0 0.0
  %260 = vmatprep.subr.mxu0 0.0
  %261 = vmatpush1.msra.mxu0 0.0
  %262 = vmatprep.subr.mxu0 0.0
  %263 = vmatpush1.msra.mxu0 0.0
  %264 = vmatprep.subr.mxu0 0.0
  %265 = vmatpush1.msra.mxu0 0.0
  %266 = vmatprep.subr.mxu0 0.0
  %267 = vmatpush1.msra.mxu0 0.0
  %268 = vmatprep.subr.mxu0 0.0
  %269 = vmatpush1.msra.mxu0 0.0
  %270 = vmatprep.subr.mxu0 0.0
  %271 = vmatpush1.msra.mxu0 0.0
  %272 = vmatprep.subr.mxu0 0.0
  %273 = vmatpush1.msra.mxu0 0.0
  %274 = vmatprep.subr.mxu0 0.0
  %275 = vmatpush1.msra.mxu0 0.0
  %276 = vmatprep.subr.mxu0 0.0
  %277 = vmatpush1.msra.mxu0 0.0
  %278 = vmatprep.subr.mxu0 0.0
  %279 = vmatpush1.msra.mxu0 0.0
  %280 = vmatprep.subr.mxu0 0.0
  %281 = vmatpush1.msra.mxu0 0.0
  %282 = vmatprep.subr.mxu0 0.0
  %283 = vmatpush1.msra.mxu0 0.0
  %284 = vmatprep.subr.mxu0 0.0
  %285 = vmatpush1.msra.mxu0 0.0
  %286 = vmatprep.subr.mxu0 0.0
  %287 = vmatpush1.msra.mxu0 0.0
  %288 = vmatprep.subr.mxu0 0.0
  %289 = vmatpush1.msra.mxu0 0.0
  %290 = vmatprep.subr.mxu0 0.0
  %291 = vmatpush1.msra.mxu0 0.0
  %292 = vmatprep.subr.mxu0 0.0
  %293 = vmatpush1.msra.mxu0 0.0
  %294 = vmatprep.subr.mxu0 0.0
  %295 = vmatpush1.msra.mxu0 0.0
  %296 = vmatprep.subr.mxu0 0.0
  %297 = vmatpush1.msra.mxu0 0.0
  %298 = vmatprep.subr.mxu0 0.0
  %299 = vmatpush1.msra.mxu0 0.0
  %300 = vmatprep.subr.mxu0 0.0
  %301 = vmatpush1.msra.mxu0 0.0
  %302 = vmatprep.subr.mxu0 0.0
  %303 = vmatpush1.msra.mxu0 0.0
  %304 = vmatprep.subr.mxu0 0.0
  %305 = vmatpush1.msra.mxu0 0.0
  %306 = vmatprep.mubr.f32.mxu0 0.0
  %307 = vmatmul.mubr.f32.gmra.mrb[0].mxu0 %v240
  %v308 = vpop.f32.mrb[0].mxu0
  %v309 = vadd.f32 0.0, %v308
  %v310 = vpop.f32.mrb[0].mxu0
  %311 = vdwg.mxu0
  %v312 = vld [vmem:[%s5] sm:$0x3]
  %v313 = vadd.f32 %v312, %v309
  %314 = vst [vmem:[%s6] sm:$0x3] %v313
  %315 = vst [vmem:[%s7] sm:$0xff] %v126
  %316 = vst [vmem:[%s7 + $0x8] sm:$0xff] %v127
  %317 = vst [vmem:[%s7 + $0x10] sm:$0xff] %v128
  %318 = vst [vmem:[%s7 + $0x18] sm:$0xff] %v129
  %319 = vst [vmem:[%s7 + $0x20] sm:$0xff] %v130
  %320 = vst [vmem:[%s7 + $0x28] sm:$0xff] %v131
  %321 = vst [vmem:[%s7 + $0x30] sm:$0xff] %v132
  %322 = vst [vmem:[%s7 + $0x38] sm:$0xff] %v133
  // Predicated region
  $region26: #{graph_conv_encoder_forward.9} parent=0 // pred_check
    _
  $region27: #{graph_conv_encoder_forward.9} parent=0 // pred_check_branch
    %324 = sbr.rel (0) target = $region29
  $region28: #{graph_conv_encoder_forward.9} parent=0 // pred_region
    _
  $region29: #{graph_conv_encoder_forward.9} parent=0 // pred_fallthru
    _
  // Predicated region
  $region30: #{graph_conv_encoder_forward.9} parent=0 // pred_check
    _
  $region31: #{graph_conv_encoder_forward.9} parent=0 // pred_check_branch
    %326 = sbr.rel (0) target = $region33
  $region32: #{graph_conv_encoder_forward.9} parent=0 // pred_region
    _
  $region33: #{graph_conv_encoder_forward.9} parent=0 // pred_fallthru
    _
  // Predicated region
  $region34: #{graph_conv_encoder_forward.9} parent=0 // pred_check
    _
  $region35: #{graph_conv_encoder_forward.9} parent=0 // pred_check_branch
    %328 = sbr.rel (0) target = $region37
  $region36: #{graph_conv_encoder_forward.9} parent=0 // pred_region
    _
  $region37: #{graph_conv_encoder_forward.9} parent=0 // pred_fallthru
    _
  // Predicated region
  $region38: #{graph_conv_encoder_forward.9} parent=0 // pred_check
    _
  $region39: #{graph_conv_encoder_forward.9} parent=0 // pred_check_branch
    %330 = sbr.rel (0) target = $region41
  $region40: #{graph_conv_encoder_forward.9} parent=0 // pred_region
    _
  $region41: #{graph_conv_encoder_forward.9} parent=0 // pred_fallthru
    _

// kernel: graph_conv_encoder_forward.13
$region0: #{graph_conv_encoder_forward.13}
  #allocation0 [shape = 'u32[]', space=smem, size = 0x4, offset = 0x4, fixed_abs, tag = 'smem constant byte address 0x4 - core index']
  #allocation1 [shape = 'u32[144,128]{1,0:T(1,128)}', space=vmem, size = 0x12000, scoped, tag = 'internal scratch']
  #allocation2 [shape = 'f32[1,1]{1,0:T(1,128)S(1)}', space=vmem, size = 0x200, scoped, tag = 'scoped memory for graph_conv_encoder_forward.13']
  %s0 = inlined_call_operand.vmem [shape: f32[64,128], index: 0, kind: input, shape index: {}]
  %s1 = inlined_call_operand.vmem [shape: f32[64,1], index: 1, kind: input, shape index: {}]
  %s2 = inlined_call_operand.vmem [shape: f32[2,64], index: 2, kind: input, shape index: {}]
  %s3 = inlined_call_operand.vmem [shape: f32[1,128], index: 3, kind: input, shape index: {}]
  %s4 = inlined_call_operand.<no memory space> [shape: f32[1,1], index: 4, kind: input, shape index: {}]
  %s5 = inlined_call_operand.vmem [shape: f32[2,128], index: 5, kind: input, shape index: {}, may-alias: {5,6}]
  %s6 = inlined_call_operand.vmem [shape: f32[2,128], index: 6, kind: output, shape index: {0}, may-alias: {5,6}]
  %s7 = inlined_call_operand.hbm [shape: f32[64,128], index: 7, kind: output, shape index: {1}]
  %8 = xla_tuple %s6, %s7
  %s9 = sld [smem:[#allocation0]]
  $region42: #{graph_conv_encoder_forward.13} parent=0
    _
  %s11 = ssub.s32 1, %s9
  %s12 = scalar_select 0, %s11, %s9
  %v13 = vstv %s4
  %14 = vst [vmem:[#allocation2] sm:$0x1] %v13
  $region1: #{graph_conv_encoder_forward.13} parent=0
    #allocation3 [shape = 'u8[32768]{0}', space=vmem, size = 0x8000, scoped, tag = 'output window, operand 1, single buffered']
    #allocation4 [shape = 's32[1]{0}', space=sflag, size = 0x4, scoped, tag = 'scoped memory for graph_conv_encoder_forward.13']
    %15 = vsyncpa [#allocation4], 0
    // Predicated region
    $region2: #{graph_conv_encoder_forward.13} parent=1 // pred_check
      _
    $region3: #{graph_conv_encoder_forward.13} parent=1 // pred_check_branch
      %17 = sbr.rel (0) target = $region5
    $region4: #{graph_conv_encoder_forward.13} parent=1 // pred_region
      _
    $region5: #{graph_conv_encoder_forward.13} parent=1 // pred_fallthru
      _
    // Predicated region
    $region6: #{graph_conv_encoder_forward.13} parent=1 // pred_check
      _
    $region7: #{graph_conv_encoder_forward.13} parent=1 // pred_check_branch
      %19 = sbr.rel (0) target = $region9
    $region8: #{graph_conv_encoder_forward.13} parent=1 // pred_region
      _
    $region9: #{graph_conv_encoder_forward.13} parent=1 // pred_fallthru
      _
    // Predicated region
    $region10: #{graph_conv_encoder_forward.13} parent=1 // pred_check
      _
    $region11: #{graph_conv_encoder_forward.13} parent=1 // pred_check_branch
      %21 = sbr.rel (0) target = $region13
    $region12: #{graph_conv_encoder_forward.13} parent=1 // pred_region
      _
    $region13: #{graph_conv_encoder_forward.13} parent=1 // pred_fallthru
      _
    // Predicated region
    $region14: #{graph_conv_encoder_forward.13} parent=1 // pred_check
      _
    $region15: #{graph_conv_encoder_forward.13} parent=1 // pred_check_branch
      %23 = sbr.rel (0) target = $region17
    $region16: #{graph_conv_encoder_forward.13} parent=1 // pred_region
      _
    $region17: #{graph_conv_encoder_forward.13} parent=1 // pred_fallthru
      _
    // Predicated region
    $region18: #{graph_conv_encoder_forward.13} parent=1 // pred_check
      _
    $region19: #{graph_conv_encoder_forward.13} parent=1 // pred_check_branch
      %25 = sbr.rel (0) target = $region21
    $region20: #{graph_conv_encoder_forward.13} parent=1 // pred_region
      _
    $region21: #{graph_conv_encoder_forward.13} parent=1 // pred_fallthru
      _
    // Predicated region
    $region22: #{graph_conv_encoder_forward.13} parent=1 // pred_check
      _
    $region23: #{graph_conv_encoder_forward.13} parent=1 // pred_check_branch
      %27 = sbr.rel (0) target = $region25
    $region24: #{graph_conv_encoder_forward.13} parent=1 // pred_region
      _
    $region25: #{graph_conv_encoder_forward.13} parent=1 // pred_fallthru
      _
    %v28 = vld [vmem:[%s0] sm:$0xff]
    %v29 = vld [vmem:[%s0 + $0x8] sm:$0xff]
    %v30 = vld [vmem:[%s0 + $0x10] sm:$0xff]
    %v31 = vld [vmem:[%s0 + $0x18] sm:$0xff]
    %v32 = vld [vmem:[%s0 + $0x20] sm:$0xff]
    %v33 = vld [vmem:[%s0 + $0x28] sm:$0xff]
    %v34 = vld [vmem:[%s0 + $0x30] sm:$0xff]
    %v35 = vld [vmem:[%s0 + $0x38] sm:$0xff]
    %v36 = vlaneseq
    %v37 = vand.u32 %v36, 127
    %vm38 = vcmp.eq.s32.totalorder %v37, 32
    %v39 = vsel %vm38, %v28, 0.0
    %v40 = vsel %vm38, %v29, 0.0
    %v41 = vsel %vm38, %v30, 0.0
    %v42 = vsel %vm38, %v31, 0.0
    %v43 = vsel %vm38, %v32, 0.0
    %v44 = vsel %vm38, %v33, 0.0
    %v45 = vsel %vm38, %v34, 0.0
    %v46 = vsel %vm38, %v35, 0.0
    %47 = vadd.xlane.f32.xlu0 %v39
    %v48 = vpop.xlane.xlu0 %47
    %49 = vadd.xlane.f32.xlu0 %v40
    %v50 = vpop.xlane.xlu0 %49
    %51 = vadd.xlane.f32.xlu0 %v41
    %v52 = vpop.xlane.xlu0 %51
    %53 = vadd.xlane.f32.xlu0 %v42
    %v54 = vpop.xlane.xlu0 %53
    %55 = vadd.xlane.f32.xlu0 %v43
    %v56 = vpop.xlane.xlu0 %55
    %57 = vadd.xlane.f32.xlu0 %v44
    %v58 = vpop.xlane.xlu0 %57
    %59 = vadd.xlane.f32.xlu0 %v45
    %v60 = vpop.xlane.xlu0 %59
    %61 = vadd.xlane.f32.xlu0 %v46
    %v62 = vpop.xlane.xlu0 %61
    %v63 = vtanh.pop %v48
    %v64 = vtanh.pop %v50
    %v65 = vtanh.pop %v52
    %v66 = vtanh.pop %v54
    %v67 = vtanh.pop %v56
    %v68 = vtanh.pop %v58
    %v69 = vtanh.pop %v60
    %v70 = vtanh.pop %v62
    %v71 = vmul.f32 %v28, %v63
    %v72 = vmul.f32 %v29, %v64
    %v73 = vmul.f32 %v30, %v65
    %v74 = vmul.f32 %v31, %v66
    %v75 = vmul.f32 %v32, %v67
    %v76 = vmul.f32 %v33, %v68
    %v77 = vmul.f32 %v34, %v69
    %v78 = vmul.f32 %v35, %v70
    %v79 = vld [vmem:[%s1] sm:$0xff]
    %v80 = vld [vmem:[%s1 + $0x8] sm:$0xff]
    %v81 = vld [vmem:[%s1 + $0x10] sm:$0xff]
    %v82 = vld [vmem:[%s1 + $0x18] sm:$0xff]
    %v83 = vld [vmem:[%s1 + $0x20] sm:$0xff]
    %v84 = vld [vmem:[%s1 + $0x28] sm:$0xff]
    %v85 = vld [vmem:[%s1 + $0x30] sm:$0xff]
    %v86 = vld [vmem:[%s1 + $0x38] sm:$0xff]
    %88 = vset.pattern.permute.xlu0 0
    %89 = vperm.xlu0 %88, %v79
    %v90 = vpop.permute.xlu0 %89
    %93 = vset.pattern.permute.xlu0 0
    %94 = vperm.xlu0 %93, %v80
    %v95 = vpop.permute.xlu0 %94
    %98 = vset.pattern.permute.xlu0 0
    %99 = vperm.xlu0 %98, %v81
    %v100 = vpop.permute.xlu0 %99
    %103 = vset.pattern.permute.xlu0 0
    %104 = vperm.xlu0 %103, %v82
    %v105 = vpop.permute.xlu0 %104
    %108 = vset.pattern.permute.xlu0 0
    %109 = vperm.xlu0 %108, %v83
    %v110 = vpop.permute.xlu0 %109
    %113 = vset.pattern.permute.xlu0 0
    %114 = vperm.xlu0 %113, %v84
    %v115 = vpop.permute.xlu0 %114
    %118 = vset.pattern.permute.xlu0 0
    %119 = vperm.xlu0 %118, %v85
    %v120 = vpop.permute.xlu0 %119
    %123 = vset.pattern.permute.xlu0 0
    %124 = vperm.xlu0 %123, %v86
    %v125 = vpop.permute.xlu0 %124
    %v127 = vmul.f32 %v71, %v90
    %v128 = vmul.f32 %v72, %v95
    %v129 = vmul.f32 %v73, %v100
    %v130 = vmul.f32 %v74, %v105
    %v131 = vmul.f32 %v75, %v110
    %v132 = vmul.f32 %v76, %v115
    %v133 = vmul.f32 %v77, %v120
    %v134 = vmul.f32 %v78, %v125
    %v135 = vld [vmem:[%s3] sm:$0x1]
    %v136 = vld [vmem:[#allocation2] sm:$0x1]
    %138 = vset.pattern.permute.xlu0 0
    %139 = vperm.xlu0 %138, %v136
    %v140 = vpop.permute.xlu0 %139
    %v142 = vlaneseq
    %v143 = vshrl.u32 %v142, 7
    %v144 = vsub.s32 0, %v143
    %v145 = vrot.slane %v140, %v144
    %146 = vmatprep.subr.mxu0 0.0
    %147 = vmatpush1.xpose.msra.mxu0 %v127
    %148 = vmatprep.subr.mxu0 0.0
    %149 = vmatpush1.xpose.msra.mxu0 %v128
    %150 = vmatprep.subr.mxu0 0.0
    %151 = vmatpush1.xpose.msra.mxu0 %v129
    %152 = vmatprep.subr.mxu0 0.0
    %153 = vmatpush1.xpose.msra.mxu0 %v130
    %154 = vmatprep.subr.mxu0 0.0
    %155 = vmatpush1.xpose.msra.mxu0 %v131
    %156 = vmatprep.subr.mxu0 0.0
    %157 = vmatpush1.xpose.msra.mxu0 %v132
    %158 = vmatprep.subr.mxu0 0.0
    %159 = vmatpush1.xpose.msra.mxu0 %v133
    %160 = vmatprep.subr.mxu0 0.0
    %161 = vmatpush1.xpose.msra.mxu0 %v134
    %162 = vmatprep.subr.mxu0 0.0
    %163 = vmatpush1.xpose.msra.mxu0 0.0
    %164 = vmatprep.subr.mxu0 0.0
    %165 = vmatpush1.xpose.msra.mxu0 0.0
    %166 = vmatprep.subr.mxu0 0.0
    %167 = vmatpush1.xpose.msra.mxu0 0.0
    %168 = vmatprep.subr.mxu0 0.0
    %169 = vmatpush1.xpose.msra.mxu0 0.0
    %170 = vmatprep.subr.mxu0 0.0
    %171 = vmatpush1.xpose.msra.mxu0 0.0
    %172 = vmatprep.subr.mxu0 0.0
    %173 = vmatpush1.xpose.msra.mxu0 0.0
    %174 = vmatprep.subr.mxu0 0.0
    %175 = vmatpush1.xpose.msra.mxu0 0.0
    %176 = vmatprep.subr.mxu0 0.0
    %177 = vmatpush1.xpose.msra.mxu0 0.0
    %178 = vmatprep.subr.mxu0 0.0
    %179 = vmatpush1.xpose.msra.mxu0 0.0
    %180 = vmatprep.subr.mxu0 0.0
    %181 = vmatpush1.xpose.msra.mxu0 0.0
    %182 = vmatprep.subr.mxu0 0.0
    %183 = vmatpush1.xpose.msra.mxu0 0.0
    %184 = vmatprep.subr.mxu0 0.0
    %185 = vmatpush1.xpose.msra.mxu0 0.0
    %186 = vmatprep.subr.mxu0 0.0
    %187 = vmatpush1.xpose.msra.mxu0 0.0
    %188 = vmatprep.subr.mxu0 0.0
    %189 = vmatpush1.xpose.msra.mxu0 0.0
    %190 = vmatprep.subr.mxu0 0.0
    %191 = vmatpush1.xpose.msra.mxu0 0.0
    %192 = vmatprep.subr.mxu0 0.0
    %193 = vmatpush1.xpose.msra.mxu0 0.0
    %194 = vmatprep.subr.mxu0 0.0
    %195 = vmatpush1.xpose.msra.mxu0 0.0
    %196 = vmatprep.subr.mxu0 0.0
    %197 = vmatpush1.xpose.msra.mxu0 0.0
    %198 = vmatprep.subr.mxu0 0.0
    %199 = vmatpush1.xpose.msra.mxu0 0.0
    %200 = vmatprep.subr.mxu0 0.0
    %201 = vmatpush1.xpose.msra.mxu0 0.0
    %202 = vmatprep.subr.mxu0 0.0
    %203 = vmatpush1.xpose.msra.mxu0 0.0
    %204 = vmatprep.subr.mxu0 0.0
    %205 = vmatpush1.xpose.msra.mxu0 0.0
    %206 = vmatprep.subr.mxu0 0.0
    %207 = vmatpush1.xpose.msra.mxu0 0.0
    %208 = vmatprep.subr.mxu0 0.0
    %209 = vmatpush1.xpose.msra.mxu0 0.0
    %210 = vmatprep.mubr.f32.mxu0 0.0
    %211 = vmatmul.mubr.f32.gmra.mrb[0].mxu0 %v135
    %v212 = vpop.f32.mrb[0].mxu0
    %v213 = vadd.f32 %v145, %v212
    %v214 = vpop.f32.mrb[0].mxu0
    %215 = vdwg.mxu0
    %v216 = vld [vmem:[%s2] sm:$0x3]
    %vm217 = vcmp.gt.f32.partialorder %v216, 0.0
    %v218 = vlaneseq
    %v219 = vshrl.u32 %v218, 7
    %v220 = vsub.s32 0, %v219
    %v221 = vrot.slane %v213, %v220
    %v222 = vsel %vm217, %v221, -1e+30
    %vm223 = vcmask 517120
    %v224 = vsel %vm223, %v222, -inf
    %225 = vmax.xlane.f32.xlu0 %v224
    %v226 = vpop.xlane.xlu0 %225
    %v227 = vsub.f32 %v222, %v226
    %v228 = vmul.f32 %v227, 1.442695
    %v229 = vpow.pop %v228
    %v230 = vmul.f32 %v229, %v216
    %v231 = vsel %vm223, %v230, 0.0
    %232 = vadd.xlane.f32.xlu0 %v231
    %v233 = vpop.xlane.xlu0 %232
    %vm234 = vcmp.gt.f32.partialorder %v233, 0.0
    %v235 = vmax.f32 %v233, 1e-30
    %v236 = vrcp.pop %v235
    %v237 = vsel %vm234, %v236, 0.0
    %v238 = vmul.f32 %v230, %v237
    %vm239 = vcmask 523264
    %v241 = vsel %vm239, %v238, 0
    %243 = vmatprep.subr.mxu0 0.0
    %244 = vmatpush1.msra.mxu0 %v127
    %245 = vmatprep.subr.mxu0 0.0
    %246 = vmatpush1.msra.mxu0 %v128
    %247 = vmatprep.subr.mxu0 0.0
    %248 = vmatpush1.msra.mxu0 %v129
    %249 = vmatprep.subr.mxu0 0.0
    %250 = vmatpush1.msra.mxu0 %v130
    %251 = vmatprep.subr.mxu0 0.0
    %252 = vmatpush1.msra.mxu0 %v131
    %253 = vmatprep.subr.mxu0 0.0
    %254 = vmatpush1.msra.mxu0 %v132
    %255 = vmatprep.subr.mxu0 0.0
    %256 = vmatpush1.msra.mxu0 %v133
    %257 = vmatprep.subr.mxu0 0.0
    %258 = vmatpush1.msra.mxu0 %v134
    %259 = vmatprep.subr.mxu0 0.0
    %260 = vmatpush1.msra.mxu0 0.0
    %261 = vmatprep.subr.mxu0 0.0
    %262 = vmatpush1.msra.mxu0 0.0
    %263 = vmatprep.subr.mxu0 0.0
    %264 = vmatpush1.msra.mxu0 0.0
    %265 = vmatprep.subr.mxu0 0.0
    %266 = vmatpush1.msra.mxu0 0.0
    %267 = vmatprep.subr.mxu0 0.0
    %268 = vmatpush1.msra.mxu0 0.0
    %269 = vmatprep.subr.mxu0 0.0
    %270 = vmatpush1.msra.mxu0 0.0
    %271 = vmatprep.subr.mxu0 0.0
    %272 = vmatpush1.msra.mxu0 0.0
    %273 = vmatprep.subr.mxu0 0.0
    %274 = vmatpush1.msra.mxu0 0.0
    %275 = vmatprep.subr.mxu0 0.0
    %276 = vmatpush1.msra.mxu0 0.0
    %277 = vmatprep.subr.mxu0 0.0
    %278 = vmatpush1.msra.mxu0 0.0
    %279 = vmatprep.subr.mxu0 0.0
    %280 = vmatpush1.msra.mxu0 0.0
    %281 = vmatprep.subr.mxu0 0.0
    %282 = vmatpush1.msra.mxu0 0.0
    %283 = vmatprep.subr.mxu0 0.0
    %284 = vmatpush1.msra.mxu0 0.0
    %285 = vmatprep.subr.mxu0 0.0
    %286 = vmatpush1.msra.mxu0 0.0
    %287 = vmatprep.subr.mxu0 0.0
    %288 = vmatpush1.msra.mxu0 0.0
    %289 = vmatprep.subr.mxu0 0.0
    %290 = vmatpush1.msra.mxu0 0.0
    %291 = vmatprep.subr.mxu0 0.0
    %292 = vmatpush1.msra.mxu0 0.0
    %293 = vmatprep.subr.mxu0 0.0
    %294 = vmatpush1.msra.mxu0 0.0
    %295 = vmatprep.subr.mxu0 0.0
    %296 = vmatpush1.msra.mxu0 0.0
    %297 = vmatprep.subr.mxu0 0.0
    %298 = vmatpush1.msra.mxu0 0.0
    %299 = vmatprep.subr.mxu0 0.0
    %300 = vmatpush1.msra.mxu0 0.0
    %301 = vmatprep.subr.mxu0 0.0
    %302 = vmatpush1.msra.mxu0 0.0
    %303 = vmatprep.subr.mxu0 0.0
    %304 = vmatpush1.msra.mxu0 0.0
    %305 = vmatprep.subr.mxu0 0.0
    %306 = vmatpush1.msra.mxu0 0.0
    %307 = vmatprep.mubr.f32.mxu0 0.0
    %308 = vmatmul.mubr.f32.gmra.mrb[0].mxu0 %v241
    %v309 = vpop.f32.mrb[0].mxu0
    %v310 = vadd.f32 0.0, %v309
    %v311 = vpop.f32.mrb[0].mxu0
    %312 = vdwg.mxu0
    %v313 = vld [vmem:[%s5] sm:$0x3]
    %v314 = vadd.f32 %v313, %v310
    %315 = vst [vmem:[%s6] sm:$0x3] %v314
    %316 = vst [vmem:[#allocation3] sm:$0xff] %v127
    %317 = vst [vmem:[#allocation3 + $0x8] sm:$0xff] %v128
    %318 = vst [vmem:[#allocation3 + $0x10] sm:$0xff] %v129
    %319 = vst [vmem:[#allocation3 + $0x18] sm:$0xff] %v130
    %320 = vst [vmem:[#allocation3 + $0x20] sm:$0xff] %v131
    %321 = vst [vmem:[#allocation3 + $0x28] sm:$0xff] %v132
    %322 = vst [vmem:[#allocation3 + $0x30] sm:$0xff] %v133
    %323 = vst [vmem:[#allocation3 + $0x38] sm:$0xff] %v134
    // Predicated region
    $region26: #{graph_conv_encoder_forward.13} parent=1 // pred_check
      _
    $region27: #{graph_conv_encoder_forward.13} parent=1 // pred_check_branch
      %325 = sbr.rel (0) target = $region29
    $region28: #{graph_conv_encoder_forward.13} parent=1 // pred_region
      _
    $region29: #{graph_conv_encoder_forward.13} parent=1 // pred_fallthru
      _
    // Predicated region
    $region30: #{graph_conv_encoder_forward.13} parent=1 // pred_check
      _
    $region31: #{graph_conv_encoder_forward.13} parent=1 // pred_check_branch
      %327 = sbr.rel (0) target = $region33
    $region32: #{graph_conv_encoder_forward.13} parent=1 // pred_region
      %s329 = ssub.s32 1024, 1024
      %330 = vsyncadd [#allocation4], %s329
      %s331 = sshll.u32 [#allocation3], 4
      %s332 = int_to_ptr.vmem [resolvable:$true] %s331
      %337 = dma.vmem_to_hbm [thread:$0]  %s332, 1024, %s7, [#allocation4], 128, 128, 8
    $region33: #{graph_conv_encoder_forward.13} parent=1 // pred_fallthru
      _
    // Predicated region
    $region34: #{graph_conv_encoder_forward.13} parent=1 // pred_check
      _
    $region35: #{graph_conv_encoder_forward.13} parent=1 // pred_check_branch
      %339 = sbr.rel (0) target = $region37
    $region36: #{graph_conv_encoder_forward.13} parent=1 // pred_region
      _
    $region37: #{graph_conv_encoder_forward.13} parent=1 // pred_fallthru
      _
    // Predicated region
    $region38: #{graph_conv_encoder_forward.13} parent=1 // pred_check
      _
    $region39: #{graph_conv_encoder_forward.13} parent=1 // pred_check_branch
      %341 = sbr.rel (0) target = $region41
    $region40: #{graph_conv_encoder_forward.13} parent=1 // pred_region
      %342 = dma.done [#allocation4], 1024
    $region41: #{graph_conv_encoder_forward.13} parent=1 // pred_fallthru
      _
    %343 = vsyncpa [#allocation4], 1

</llo_original>
